<compile_context>
chip_gen: v6e
topology: v6e:2x2x1
jax: 0.10.0
libtpu: 0.0.40
codegen_flags: <defaults>
</compile_context>

<pallas_src>
import numpy as np
import jax
import jax.numpy as jnp
from jax.experimental import pallas as pl
from jax.experimental.pallas import tpu as pltpu

B, H, W = 2, 4, 16            # x is (B, 1, H, W); B*H*W = 128 = one vreg lane row
EPS = 1e-5
NEG = np.float32(-1e30)       # additive mask value for excluded pool positions

# (Cin, Cout, pooled_output_width) per ConvLayer2D block; pooled height is 1.
BLOCKS = [(1, 8, 15), (8, 16, 8), (16, 32, 4), (32, 32, 2)]
C1, C2, C3, C4 = 8, 16, 32, 32
W1_, W2_, W3_, W4_ = 15, 8, 4, 2


def _align8(n):
    return -(-n // 8) * 8


# Row offsets of each item inside the packed (ROWS, LANES) parameter slab.
R1 = 0                            # w1 (8,1)  @ col 0, b1 @ col 1
R2 = R1 + _align8(C1)             # w2' (16,8)  @ cols 0..7,  b2' @ col 8
R3 = R2 + _align8(C2)             # w3' (32,16) @ cols 0..15, b3' @ col 16
R4 = R3 + _align8(C3)             # w4' (32,32) @ cols 0..31, b4'/s4/t4 @ cols 32..34
RM1 = R4 + _align8(C4)            # block-1 combined height+width pool mask (B*15, 128)
RM2 = RM1 + _align8(B * W1_)      # block-2 width pool mask (B*8,  B*15)
RM3 = RM2 + _align8(B * W2_)      # block-3 width pool mask (B*4,  B*8)
RM4 = RM3 + _align8(B * W3_)      # block-4 width pool mask (B*2,  B*4)
ROWS = RM4 + _align8(B * W4_)     # 152
LANES = B * H * W                 # 128


def _pool_bounds(w_in, w_out):
    """PyTorch adaptive-max-pool window [lo, hi) per output index."""
    lo = [(j * w_in) // w_out for j in range(w_out)]
    hi = [-((-(j + 1) * w_in) // w_out) for j in range(w_out)]
    return lo, hi


def _width_pool_mask(s_in, s_out):
    """(B*s_out, B*s_in) additive mask: 0 inside the pool window, NEG elsewhere."""
    lo, hi = _pool_bounds(s_in, s_out)
    m = np.full((B * s_out, B * s_in), NEG, np.float32)
    for b in range(B):
        for j in range(s_out):
            m[b * s_out + j, b * s_in + lo[j]:b * s_in + hi[j]] = 0.0
    return m


def _block1_pool_mask(w_out):
    """(B*w_out, B*H*W) additive mask fusing the height max with width pooling."""
    lo, hi = _pool_bounds(W, w_out)
    m = np.full((B * w_out, B * H * W), NEG, np.float32)
    for b in range(B):
        for j in range(w_out):
            for h in range(H):
                base = b * H * W + h * W
                m[b * w_out + j, base + lo[j]:base + hi[j]] = 0.0
    return m


def wind_encoder_kernel(x_ref, p_ref, out_ref):
    x = x_ref[...]                                            # (1, 128) lane-dense

    # block 1: 1x1 conv (Cin=1) + ReLU; its BN is folded into block 2's conv.
    w1 = p_ref[R1:R1 + C1, 0:1]                               # (8, 1)
    b1 = p_ref[R1:R1 + C1, 1:2]
    z = jnp.maximum(w1 * x + b1, 0.0)                         # (8, 128)
    m1 = p_ref[RM1:RM1 + B * W1_, :]                          # (30, 128)
    a = jnp.max(z[:, None, :] + m1[None, :, :], axis=-1)      # (8, 30)

    # block 2: channel matmul + ReLU; its BN is folded into block 3's conv.
    w2 = p_ref[R2:R2 + C2, 0:C1]
    b2 = p_ref[R2:R2 + C2, C1:C1 + 1]
    z = jnp.maximum(jnp.dot(w2, a, preferred_element_type=jnp.float32) + b2, 0.0)
    m2 = p_ref[RM2:RM2 + B * W2_, 0:B * W1_]
    a = jnp.max(z[:, None, :] + m2[None, :, :], axis=-1)      # (16, 16)

    # block 3: channel matmul + ReLU; its BN is folded into block 4's conv.
    w3 = p_ref[R3:R3 + C3, 0:C2]
    b3 = p_ref[R3:R3 + C3, C2:C2 + 1]
    z = jnp.maximum(jnp.dot(w3, a, preferred_element_type=jnp.float32) + b3, 0.0)
    m3 = p_ref[RM3:RM3 + B * W3_, 0:B * W2_]
    a = jnp.max(z[:, None, :] + m3[None, :, :], axis=-1)      # (32, 8)

    # block 4: channel matmul + ReLU + BN (kept in-kernel) + pool.
    w4 = p_ref[R4:R4 + C4, 0:C3]
    b4 = p_ref[R4:R4 + C4, C3:C3 + 1]
    s4 = p_ref[R4:R4 + C4, C3 + 1:C3 + 2]
    t4 = p_ref[R4:R4 + C4, C3 + 2:C3 + 3]
    z = jnp.dot(w4, a, preferred_element_type=jnp.float32) + b4
    z = jnp.maximum(z, 0.0) * s4 + t4
    m4 = p_ref[RM4:RM4 + B * W4_, 0:B * W3_]
    out_ref[...] = jnp.max(z[:, None, :] + m4[None, :, :], axis=-1)   # (32, 4)


def init_params(key):
    """Deterministic synthetic parameters (conv W/b, BN folded scale/shift)."""
    params = []
    for i, (cin, cout, _) in enumerate(BLOCKS):
        kw, kb, kg, kbe, km, kv = jax.random.split(jax.random.fold_in(key, i), 6)
        bound = 1.0 / np.sqrt(cin)                            # PyTorch conv init range
        w = jax.random.uniform(kw, (cout, cin), jnp.float32, -bound, bound)
        b = jax.random.uniform(kb, (cout, 1), jnp.float32, -bound, bound)
        gamma = jax.random.uniform(kg, (cout, 1), jnp.float32, 0.5, 1.5)
        beta = 0.1 * jax.random.normal(kbe, (cout, 1), jnp.float32)
        rmean = 0.1 * jax.random.normal(km, (cout, 1), jnp.float32)
        rvar = jax.random.uniform(kv, (cout, 1), jnp.float32, 0.5, 1.5)
        scale = gamma / jnp.sqrt(rvar + EPS)
        shift = beta - rmean * scale
        params.append((w, b, scale, shift))
    return params


def pack_operands(params):
    """Fold eval-mode BN of blocks 1-3 into the next conv and pack every weight,
    bias and pooling mask into a single (ROWS, 128) f32 slab (one DMA)."""
    p = [[np.asarray(a, np.float32) for a in blk] for blk in params]
    (w1, b1, s1, t1), (w2, b2, s2, t2), (w3, b3, s3, t3), (w4, b4, s4, t4) = p
    # Max-pool commutes with the per-channel affine only for positive scales;
    # guaranteed by init_params (gamma in (0.5, 1.5), running var > 0).
    assert (s1 > 0).all() and (s2 > 0).all() and (s3 > 0).all(), \
        "BN fold through max-pool requires strictly positive BN scales"
    w2f, b2f = w2 * s1[:, 0][None, :], w2 @ t1 + b2
    w3f, b3f = w3 * s2[:, 0][None, :], w3 @ t2 + b3
    w4f, b4f = w4 * s3[:, 0][None, :], w4 @ t3 + b4

    packed = np.zeros((ROWS, LANES), np.float32)
    packed[R1:R1 + C1, 0:1] = w1
    packed[R1:R1 + C1, 1:2] = b1
    packed[R2:R2 + C2, 0:C1] = w2f
    packed[R2:R2 + C2, C1:C1 + 1] = b2f
    packed[R3:R3 + C3, 0:C2] = w3f
    packed[R3:R3 + C3, C2:C2 + 1] = b3f
    packed[R4:R4 + C4, 0:C3] = w4f
    packed[R4:R4 + C4, C3:C3 + 1] = b4f
    packed[R4:R4 + C4, C3 + 1:C3 + 2] = s4
    packed[R4:R4 + C4, C3 + 2:C3 + 3] = t4
    packed[RM1:RM1 + B * W1_, :] = _block1_pool_mask(W1_)
    packed[RM2:RM2 + B * W2_, 0:B * W1_] = _width_pool_mask(W1_, W2_)
    packed[RM3:RM3 + B * W3_, 0:B * W2_] = _width_pool_mask(W2_, W3_)
    packed[RM4:RM4 + B * W4_, 0:B * W3_] = _width_pool_mask(W3_, W4_)
    return jnp.asarray(packed)


def wind_encoder_forward(x, params):
    packed = pack_operands(params)
    x2d = x.reshape(1, B * H * W)                      # fold batch onto the lane axis

    out = pl.pallas_call(
        wind_encoder_kernel,
        out_shape=jax.ShapeDtypeStruct((C4, B * W4_), jnp.float32),
        grid_spec=pltpu.PrefetchScalarGridSpec(
            num_scalar_prefetch=0,
            grid=(1,),
            in_specs=[pl.BlockSpec((1, B * H * W), lambda i: (0, 0)),
                      pl.BlockSpec((ROWS, LANES), lambda i: (0, 0))],
            out_specs=pl.BlockSpec((C4, B * W4_), lambda i: (0, 0)),
        ),
        compiler_params=pltpu.CompilerParams(
            dimension_semantics=("arbitrary",)),
        cost_estimate=pl.CostEstimate(
            flops=2 * (C1 * LANES + C2 * C1 * B * W1_
                       + C3 * C2 * B * W2_ + C4 * C3 * B * W3_),
            transcendentals=0,
            bytes_accessed=4 * (LANES + ROWS * LANES + C4 * B * W4_)),
    )(x2d, packed)

    # (32, B*2) lane-dense kernel output -> (B, 32, 2) -> (B, 64) = .view(B, -1)
    return out.reshape(C4, B, W4_).transpose(1, 0, 2).reshape(B, C4 * W4_)


def reference_forward(x, params):
    """Pure-JAX reference (same eval-mode semantics) for verification."""
    a = x                                              # (B, C, H, W)
    for (w, b, s, t), (_, _, w_out) in zip(params, BLOCKS):
        _, _, _, Ww = a.shape
        z = jnp.einsum('oc,bchw->bohw', w, a,
                       precision=jax.lax.Precision.HIGHEST)
        z = z + b[None, :, :, None]
        z = jnp.maximum(z, 0.0)
        z = z * s[None, :, :, None] + t[None, :, :, None]
        z = jnp.max(z, axis=2, keepdims=True)          # height -> 1
        cols = []
        for j in range(w_out):
            lo = (j * Ww) // w_out
            hi = -((-(j + 1) * Ww) // w_out)
            cols.append(jnp.max(z[..., lo:hi], axis=-1, keepdims=True))
        a = jnp.concatenate(cols, axis=-1)
    return a.reshape(a.shape[0], -1)


if __name__ == "__main__":
    key = jax.random.PRNGKey(0)
    kx, kp = jax.random.split(key)
    x = jax.random.normal(kx, (B, 1, H, W), jnp.float32)
    params = init_params(kp)

    out = jax.block_until_ready(wind_encoder_forward(x, params))
    ref = jax.block_until_ready(reference_forward(x, params))

    assert out.shape == (B, C4 * W4_), out.shape
    np.testing.assert_allclose(np.asarray(out), np.asarray(ref),
                               rtol=1e-4, atol=1e-4)
    print("KERNEL_OK")
</pallas_src>

<mosaic_0001>
module attributes {stable_mosaic.version = 11 : i64} {
  func.func @wind_encoder_kernel(%arg0: i32, %arg1: memref<1x128xf32, #tpu.memory_space<vmem>>, %arg2: memref<152x128xf32, #tpu.memory_space<vmem>>, %arg3: memref<32x4xf32, #tpu.memory_space<vmem>>) attributes {dimension_semantics = [#tpu.dimension_semantics<arbitrary>], iteration_bounds = array<i64: 1>, scalar_prefetch = 0 : i64, scratch_operands = 0 : i64, tpu.core_type = #tpu.core_type<tc>, window_params = [{pipeline_mode = #tpu.pipeline_mode<synchronous>, transform_indices = @transform_0, window_bounds = array<i64: 1, 128>}, {pipeline_mode = #tpu.pipeline_mode<synchronous>, transform_indices = @transform_1, window_bounds = array<i64: 152, 128>}, {pipeline_mode = #tpu.pipeline_mode<synchronous>, transform_indices = @transform_2, window_bounds = array<i64: 32, 4>}]} {
    %c0 = arith.constant 0 : index
    %c0_0 = arith.constant 0 : index
    %0 = vector.load %arg1[%c0, %c0_0] : memref<1x128xf32, #tpu.memory_space<vmem>>, vector<1x128xf32>
    %c0_1 = arith.constant 0 : index
    %c0_2 = arith.constant 0 : index
    %1 = vector.load %arg2[%c0_1, %c0_2] : memref<152x128xf32, #tpu.memory_space<vmem>>, vector<8x1xf32>
    %c0_3 = arith.constant 0 : index
    %c1 = arith.constant 1 : index
    %2 = vector.load %arg2[%c0_3, %c1] : memref<152x128xf32, #tpu.memory_space<vmem>>, vector<8x1xf32>
    %3 = vector.broadcast %1 : vector<8x1xf32> to vector<8x128xf32>
    %4 = vector.broadcast %0 : vector<1x128xf32> to vector<8x128xf32>
    %5 = arith.mulf %3, %4 : vector<8x128xf32>
    %6 = vector.broadcast %2 : vector<8x1xf32> to vector<8x128xf32>
    %7 = arith.addf %5, %6 : vector<8x128xf32>
    %cst = arith.constant 0.000000e+00 : f32
    %8 = vector.broadcast %cst : f32 to vector<8x128xf32>
    %9 = arith.maximumf %7, %8 : vector<8x128xf32>
    %c88 = arith.constant 88 : index
    %c0_4 = arith.constant 0 : index
    %10 = vector.load %arg2[%c88, %c0_4] : memref<152x128xf32, #tpu.memory_space<vmem>>, vector<30x128xf32>
    %11 = vector.shape_cast %9 : vector<8x128xf32> to vector<8x1x128xf32>
    %12 = vector.shape_cast %10 : vector<30x128xf32> to vector<1x30x128xf32>
    %13 = vector.broadcast %11 : vector<8x1x128xf32> to vector<8x30x128xf32>
    %14 = vector.broadcast %12 : vector<1x30x128xf32> to vector<8x30x128xf32>
    %15 = arith.addf %13, %14 : vector<8x30x128xf32>
    %cst_5 = arith.constant dense<0xFF800000> : vector<8x30xf32>
    %16 = vector.multi_reduction <maximumf>, %15, %cst_5 [2] : vector<8x30x128xf32> to vector<8x30xf32>
    %c8 = arith.constant 8 : index
    %c0_6 = arith.constant 0 : index
    %17 = vector.load %arg2[%c8, %c0_6] : memref<152x128xf32, #tpu.memory_space<vmem>>, vector<16x8xf32>
    %c8_7 = arith.constant 8 : index
    %c8_8 = arith.constant 8 : index
    %18 = vector.load %arg2[%c8_7, %c8_8] : memref<152x128xf32, #tpu.memory_space<vmem>>, vector<16x1xf32>
    %cst_9 = arith.constant dense<0.000000e+00> : vector<16x30xf32>
    %19 = tpu.matmul %17, %16, %cst_9 {dimension_numbers = #tpu.dot_dimension_numbers<[1], [0], [0], [1], [0, 0, 1, 1], [], []>} : vector<16x8xf32>, vector<8x30xf32>, vector<16x30xf32> -> vector<16x30xf32>
    %20 = vector.broadcast %18 : vector<16x1xf32> to vector<16x30xf32>
    %21 = arith.addf %19, %20 : vector<16x30xf32>
    %cst_10 = arith.constant 0.000000e+00 : f32
    %22 = vector.broadcast %cst_10 : f32 to vector<16x30xf32>
    %23 = arith.maximumf %21, %22 : vector<16x30xf32>
    %c120 = arith.constant 120 : index
    %c0_11 = arith.constant 0 : index
    %24 = vector.load %arg2[%c120, %c0_11] : memref<152x128xf32, #tpu.memory_space<vmem>>, vector<16x30xf32>
    %25 = vector.shape_cast %23 : vector<16x30xf32> to vector<16x1x30xf32>
    %26 = vector.shape_cast %24 : vector<16x30xf32> to vector<1x16x30xf32>
    %27 = vector.broadcast %25 : vector<16x1x30xf32> to vector<16x16x30xf32>
    %28 = vector.broadcast %26 : vector<1x16x30xf32> to vector<16x16x30xf32>
    %29 = arith.addf %27, %28 : vector<16x16x30xf32>
    %cst_12 = arith.constant dense<0xFF800000> : vector<16x16xf32>
    %30 = vector.multi_reduction <maximumf>, %29, %cst_12 [2] : vector<16x16x30xf32> to vector<16x16xf32>
    %c24 = arith.constant 24 : index
    %c0_13 = arith.constant 0 : index
    %31 = vector.load %arg2[%c24, %c0_13] : memref<152x128xf32, #tpu.memory_space<vmem>>, vector<32x16xf32>
    %c24_14 = arith.constant 24 : index
    %c16 = arith.constant 16 : index
    %32 = vector.load %arg2[%c24_14, %c16] : memref<152x128xf32, #tpu.memory_space<vmem>>, vector<32x1xf32>
    %cst_15 = arith.constant dense<0.000000e+00> : vector<32x16xf32>
    %33 = tpu.matmul %31, %30, %cst_15 {dimension_numbers = #tpu.dot_dimension_numbers<[1], [0], [0], [1], [0, 0, 1, 1], [], []>} : vector<32x16xf32>, vector<16x16xf32>, vector<32x16xf32> -> vector<32x16xf32>
    %34 = vector.broadcast %32 : vector<32x1xf32> to vector<32x16xf32>
    %35 = arith.addf %33, %34 : vector<32x16xf32>
    %cst_16 = arith.constant 0.000000e+00 : f32
    %36 = vector.broadcast %cst_16 : f32 to vector<32x16xf32>
    %37 = arith.maximumf %35, %36 : vector<32x16xf32>
    %c136 = arith.constant 136 : index
    %c0_17 = arith.constant 0 : index
    %38 = vector.load %arg2[%c136, %c0_17] : memref<152x128xf32, #tpu.memory_space<vmem>>, vector<8x16xf32>
    %39 = vector.shape_cast %37 : vector<32x16xf32> to vector<32x1x16xf32>
    %40 = vector.shape_cast %38 : vector<8x16xf32> to vector<1x8x16xf32>
    %41 = vector.broadcast %39 : vector<32x1x16xf32> to vector<32x8x16xf32>
    %42 = vector.broadcast %40 : vector<1x8x16xf32> to vector<32x8x16xf32>
    %43 = arith.addf %41, %42 : vector<32x8x16xf32>
    %cst_18 = arith.constant dense<0xFF800000> : vector<32x8xf32>
    %44 = vector.multi_reduction <maximumf>, %43, %cst_18 [2] : vector<32x8x16xf32> to vector<32x8xf32>
    %c56 = arith.constant 56 : index
    %c0_19 = arith.constant 0 : index
    %45 = vector.load %arg2[%c56, %c0_19] : memref<152x128xf32, #tpu.memory_space<vmem>>, vector<32x32xf32>
    %c56_20 = arith.constant 56 : index
    %c32 = arith.constant 32 : index
    %46 = vector.load %arg2[%c56_20, %c32] : memref<152x128xf32, #tpu.memory_space<vmem>>, vector<32x1xf32>
    %c56_21 = arith.constant 56 : index
    %c33 = arith.constant 33 : index
    %47 = vector.load %arg2[%c56_21, %c33] : memref<152x128xf32, #tpu.memory_space<vmem>>, vector<32x1xf32>
    %c56_22 = arith.constant 56 : index
    %c34 = arith.constant 34 : index
    %48 = vector.load %arg2[%c56_22, %c34] : memref<152x128xf32, #tpu.memory_space<vmem>>, vector<32x1xf32>
    %cst_23 = arith.constant dense<0.000000e+00> : vector<32x8xf32>
    %49 = tpu.matmul %45, %44, %cst_23 {dimension_numbers = #tpu.dot_dimension_numbers<[1], [0], [0], [1], [0, 0, 1, 1], [], []>} : vector<32x32xf32>, vector<32x8xf32>, vector<32x8xf32> -> vector<32x8xf32>
    %50 = vector.broadcast %46 : vector<32x1xf32> to vector<32x8xf32>
    %51 = arith.addf %49, %50 : vector<32x8xf32>
    %cst_24 = arith.constant 0.000000e+00 : f32
    %52 = vector.broadcast %cst_24 : f32 to vector<32x8xf32>
    %53 = arith.maximumf %51, %52 : vector<32x8xf32>
    %54 = vector.broadcast %47 : vector<32x1xf32> to vector<32x8xf32>
    %55 = arith.mulf %53, %54 : vector<32x8xf32>
    %56 = vector.broadcast %48 : vector<32x1xf32> to vector<32x8xf32>
    %57 = arith.addf %55, %56 : vector<32x8xf32>
    %c144 = arith.constant 144 : index
    %c0_25 = arith.constant 0 : index
    %58 = vector.load %arg2[%c144, %c0_25] : memref<152x128xf32, #tpu.memory_space<vmem>>, vector<4x8xf32>
    %59 = vector.shape_cast %57 : vector<32x8xf32> to vector<32x1x8xf32>
    %60 = vector.shape_cast %58 : vector<4x8xf32> to vector<1x4x8xf32>
    %61 = vector.broadcast %59 : vector<32x1x8xf32> to vector<32x4x8xf32>
    %62 = vector.broadcast %60 : vector<1x4x8xf32> to vector<32x4x8xf32>
    %63 = arith.addf %61, %62 : vector<32x4x8xf32>
    %cst_26 = arith.constant dense<0xFF800000> : vector<32x4xf32>
    %64 = vector.multi_reduction <maximumf>, %63, %cst_26 [2] : vector<32x4x8xf32> to vector<32x4xf32>
    %c0_27 = arith.constant 0 : index
    %c0_28 = arith.constant 0 : index
    %65 = vector.load %arg3[%c0_27, %c0_28] : memref<32x4xf32, #tpu.memory_space<vmem>>, vector<32x4xf32>
    tpu.vector_store %arg3[%c0_27, %c0_28], %64 {strides = array<i32>} : memref<32x4xf32, #tpu.memory_space<vmem>>, vector<32x4xf32>,
    return
  }
  func.func @transform_0(%arg0: i32) -> (i32, i32) {
    %c0_i32 = arith.constant 0 : i32
    %c0_i32_0 = arith.constant 0 : i32
    %c0_i32_1 = arith.constant 0 : i32
    return %c0_i32, %c0_i32_0 : i32, i32
  }
  func.func @transform_1(%arg0: i32) -> (i32, i32) {
    %c0_i32 = arith.constant 0 : i32
    %c0_i32_0 = arith.constant 0 : i32
    %c0_i32_1 = arith.constant 0 : i32
    return %c0_i32, %c0_i32_0 : i32, i32
  }
  func.func @transform_2(%arg0: i32) -> (i32, i32) {
    %c0_i32 = arith.constant 0 : i32
    %c0_i32_0 = arith.constant 0 : i32
    %c0_i32_1 = arith.constant 0 : i32
    return %c0_i32, %c0_i32_0 : i32, i32
  }
}

</mosaic_0001>

<llo_original>
// kernel: tpu_custom_call.1
$region0: #{tpu_custom_call.1}
  #allocation0 [shape = 'u32[]', space=smem, size = 0x4, offset = 0x4, fixed_abs, tag = 'smem constant byte address 0x4 - core index']
  #allocation1 [shape = 'u32[144,128]{1,0:T(1,128)}', space=vmem, size = 0x12000, scoped, tag = 'internal scratch']
  %s0 = inlined_call_operand.hbm [shape: f32[1,128], index: 0, kind: input, shape index: {}]
  %s1 = inlined_call_operand.hbm [shape: f32[152,128], index: 1, kind: input, shape index: {}]
  %s2 = inlined_call_operand.vmem [shape: f32[32,4], index: 2, kind: output, shape index: {}]
  %s3 = sld [smem:[#allocation0]]
  $region26: #{tpu_custom_call.1} parent=0
    _
  %s5 = ssub.s32 1, %s3
  %s6 = scalar_select 0, %s5, %s3
  $region1: #{tpu_custom_call.1} parent=0
    #allocation2 [shape = 'u8[512]{0}', space=vmem, size = 0x400, scoped, tag = 'input window, operand 0, single buffered']
    #allocation3 [shape = 's32[1]{0}', space=sflag, size = 0x4, scoped, tag = 'scoped memory for tpu_custom_call.1']
    #allocation4 [shape = 'u8[77824]{0}', space=vmem, size = 0x13000, scoped, tag = 'input window, operand 1, single buffered']
    #allocation5 [shape = 's32[1]{0}', space=sflag, size = 0x4, scoped, tag = 'scoped memory for tpu_custom_call.1']
    %7 = vsyncpa [#allocation3], 0
    %8 = vsyncpa [#allocation5], 0
    // Predicated region
    $region2: #{tpu_custom_call.1} parent=1 // pred_check
      _
    $region3: #{tpu_custom_call.1} parent=1 // pred_check_branch
      %10 = sbr.rel (0) target = $region5
    $region4: #{tpu_custom_call.1} parent=1 // pred_region
      %s12 = ssub.s32 16, 16
      %13 = vsyncadd [#allocation3], %s12
      %s15 = sshll.u32 [#allocation2], 4
      %s16 = int_to_ptr.vmem [resolvable:$true] %s15
      %18 = dma.hbm_to_vmem [thread:$0]  %s0, 16, %s16, [#allocation3]
    $region5: #{tpu_custom_call.1} parent=1 // pred_fallthru
      _
    // Predicated region
    $region6: #{tpu_custom_call.1} parent=1 // pred_check
      _
    $region7: #{tpu_custom_call.1} parent=1 // pred_check_branch
      %20 = sbr.rel (0) target = $region9
    $region8: #{tpu_custom_call.1} parent=1 // pred_region
      %s22 = ssub.s32 2432, 2432
      %23 = vsyncadd [#allocation5], %s22
      %s24 = sshll.u32 [#allocation4], 4
      %s25 = int_to_ptr.vmem [resolvable:$true] %s24
      %30 = dma.hbm_to_vmem [thread:$0]  %s1, 2432, %s25, [#allocation5], 128, 128, 8
    $region9: #{tpu_custom_call.1} parent=1 // pred_fallthru
      _
    // Predicated region
    $region10: #{tpu_custom_call.1} parent=1 // pred_check
      _
    $region11: #{tpu_custom_call.1} parent=1 // pred_check_branch
      %32 = sbr.rel (0) target = $region13
    $region12: #{tpu_custom_call.1} parent=1 // pred_region
      %33 = dma.done [#allocation3], 16
    $region13: #{tpu_custom_call.1} parent=1 // pred_fallthru
      _
    // Predicated region
    $region14: #{tpu_custom_call.1} parent=1 // pred_check
      _
    $region15: #{tpu_custom_call.1} parent=1 // pred_check_branch
      %35 = sbr.rel (0) target = $region17
    $region16: #{tpu_custom_call.1} parent=1 // pred_region
      %36 = dma.done [#allocation5], 2432
    $region17: #{tpu_custom_call.1} parent=1 // pred_fallthru
      _
    %v37 = vld [vmem:[#allocation2] sm:$0x1]
    %v38 = vld [vmem:[#allocation4] sm:$0xff]
    %40 = vset.pattern.permute.xlu0 0
    %41 = vperm.xlu0 %40, %v38
    %v42 = vpop.permute.xlu0 %41
    %v45 = vlaneseq
    %v46 = vshrl.u32 %v45, 7
    %v47 = vsub.s32 0, %v46
    %v48 = vrot.slane %v37, %v47
    %v50 = vmul.f32 %v42, %v48
    %51 = vset.pattern.permute.xlu0 1
    %52 = vperm.xlu0 %51, %v38
    %v53 = vpop.permute.xlu0 %52
    %v55 = vadd.f32 %v50, %v53
    %v56 = vmax.f32 %v55, 0.0
    %v57 = vld [vmem:[#allocation4 + $0x58] sm:$0xff]
    %v58 = vld [vmem:[#allocation4 + $0x60] sm:$0xff]
    %v59 = vld [vmem:[#allocation4 + $0x68] sm:$0xff]
    %v60 = vld [vmem:[#allocation4 + $0x70] sm:$0x3f]
    %v62 = vcombine.high %v56, %v56
    %v64 = vunpack.c.l.s4 1966171168
    %v65 = vunpack.c.0.s8 %v64
    %v66 = vlaneseq
    %v67 = vshrl.u32 %v66, 7
    %v68 = vsub.s32 %v65, %v67
    %v69 = vrot.slane %v56, %v68
    %v71 = vunpack.c.l.s4 1966171168
    %v72 = vunpack.c.0.s8 %v71
    %v73 = vlaneseq
    %v74 = vshrl.u32 %v73, 7
    %v75 = vsub.s32 %v72, %v74
    %v76 = vrot.slane %v62, %v75
    %v77 = vcombine.high %v69, %v69
    %v78 = vcombine.high %v76, %v76
    %v80 = vunpack.c.l.s4 1966171168
    %v81 = vunpack.c.0.s8 %v80
    %v82 = vlaneseq
    %v83 = vshrl.u32 %v82, 7
    %v84 = vsub.s32 %v81, %v83
    %v85 = vrot.slane %v69, %v84
    %v87 = vunpack.c.l.s4 1966171168
    %v88 = vunpack.c.0.s8 %v87
    %v89 = vlaneseq
    %v90 = vshrl.u32 %v89, 7
    %v91 = vsub.s32 %v88, %v90
    %v92 = vrot.slane %v76, %v91
    %v94 = vunpack.c.l.s4 1966171168
    %v95 = vunpack.c.0.s8 %v94
    %v96 = vlaneseq
    %v97 = vshrl.u32 %v96, 7
    %v98 = vsub.s32 %v95, %v97
    %v99 = vrot.slane %v77, %v98
    %v101 = vunpack.c.l.s4 1966171168
    %v102 = vunpack.c.0.s8 %v101
    %v103 = vlaneseq
    %v104 = vshrl.u32 %v103, 7
    %v105 = vsub.s32 %v102, %v104
    %v106 = vrot.slane %v78, %v105
    %v107 = vcombine.high %v85, %v85
    %v108 = vcombine.high %v92, %v92
    %v109 = vcombine.high %v99, %v99
    %v110 = vcombine.high %v106, %v106
    %v111 = vlaneseq
    %v112 = vshrl.u32 %v111, 7
    %v113 = vsub.s32 0, %v112
    %v114 = vrot.slane %v85, %v113
    %v115 = vlaneseq
    %v116 = vshrl.u32 %v115, 7
    %v117 = vsub.s32 0, %v116
    %v118 = vrot.slane %v99, %v117
    %v119 = vlaneseq
    %v120 = vshrl.u32 %v119, 7
    %v121 = vsub.s32 0, %v120
    %v122 = vrot.slane %v107, %v121
    %v123 = vlaneseq
    %v124 = vshrl.u32 %v123, 7
    %v125 = vsub.s32 0, %v124
    %v126 = vrot.slane %v109, %v125
    %v127 = vlaneseq
    %v128 = vshrl.u32 %v127, 7
    %v129 = vsub.s32 0, %v128
    %v130 = vrot.slane %v92, %v129
    %v131 = vlaneseq
    %v132 = vshrl.u32 %v131, 7
    %v133 = vsub.s32 0, %v132
    %v134 = vrot.slane %v106, %v133
    %v135 = vlaneseq
    %v136 = vshrl.u32 %v135, 7
    %v137 = vsub.s32 0, %v136
    %v138 = vrot.slane %v108, %v137
    %v139 = vlaneseq
    %v140 = vshrl.u32 %v139, 7
    %v141 = vsub.s32 0, %v140
    %v142 = vrot.slane %v110, %v141
    %v151 = vadd.f32 %v114, %v57
    %v152 = vadd.f32 %v114, %v58
    %v153 = vadd.f32 %v114, %v59
    %v154 = vadd.f32 %v114, %v60
    %v155 = vadd.f32 %v118, %v57
    %v156 = vadd.f32 %v118, %v58
    %v157 = vadd.f32 %v118, %v59
    %v158 = vadd.f32 %v118, %v60
    %v159 = vadd.f32 %v122, %v57
    %v160 = vadd.f32 %v122, %v58
    %v161 = vadd.f32 %v122, %v59
    %v162 = vadd.f32 %v122, %v60
    %v163 = vadd.f32 %v126, %v57
    %v164 = vadd.f32 %v126, %v58
    %v165 = vadd.f32 %v126, %v59
    %v166 = vadd.f32 %v126, %v60
    %v167 = vadd.f32 %v130, %v57
    %v168 = vadd.f32 %v130, %v58
    %v169 = vadd.f32 %v130, %v59
    %v170 = vadd.f32 %v130, %v60
    %v171 = vadd.f32 %v134, %v57
    %v172 = vadd.f32 %v134, %v58
    %v173 = vadd.f32 %v134, %v59
    %v174 = vadd.f32 %v134, %v60
    %v175 = vadd.f32 %v138, %v57
    %v176 = vadd.f32 %v138, %v58
    %v177 = vadd.f32 %v138, %v59
    %v178 = vadd.f32 %v138, %v60
    %v179 = vadd.f32 %v142, %v57
    %v180 = vadd.f32 %v142, %v58
    %v181 = vadd.f32 %v142, %v59
    %v182 = vadd.f32 %v142, %v60
    %183 = vmax.xlane.f32.xlu0 %v151
    %v184 = vpop.xlane.xlu0 %183
    %185 = vmax.xlane.f32.xlu0 %v152
    %v186 = vpop.xlane.xlu0 %185
    %187 = vmax.xlane.f32.xlu0 %v153
    %v188 = vpop.xlane.xlu0 %187
    %vm189 = vcmask 1045504
    %v190 = vsel %vm189, %v154, -inf
    %191 = vmax.xlane.f32.xlu0 %v190
    %v192 = vpop.xlane.xlu0 %191
    %193 = vmax.xlane.f32.xlu0 %v155
    %v194 = vpop.xlane.xlu0 %193
    %195 = vmax.xlane.f32.xlu0 %v156
    %v196 = vpop.xlane.xlu0 %195
    %197 = vmax.xlane.f32.xlu0 %v157
    %v198 = vpop.xlane.xlu0 %197
    %v199 = vsel %vm189, %v158, -inf
    %200 = vmax.xlane.f32.xlu0 %v199
    %v201 = vpop.xlane.xlu0 %200
    %202 = vmax.xlane.f32.xlu0 %v159
    %v203 = vpop.xlane.xlu0 %202
    %204 = vmax.xlane.f32.xlu0 %v160
    %v205 = vpop.xlane.xlu0 %204
    %206 = vmax.xlane.f32.xlu0 %v161
    %v207 = vpop.xlane.xlu0 %206
    %v208 = vsel %vm189, %v162, -inf
    %209 = vmax.xlane.f32.xlu0 %v208
    %v210 = vpop.xlane.xlu0 %209
    %211 = vmax.xlane.f32.xlu0 %v163
    %v212 = vpop.xlane.xlu0 %211
    %213 = vmax.xlane.f32.xlu0 %v164
    %v214 = vpop.xlane.xlu0 %213
    %215 = vmax.xlane.f32.xlu0 %v165
    %v216 = vpop.xlane.xlu0 %215
    %v217 = vsel %vm189, %v166, -inf
    %218 = vmax.xlane.f32.xlu0 %v217
    %v219 = vpop.xlane.xlu0 %218
    %220 = vmax.xlane.f32.xlu0 %v167
    %v221 = vpop.xlane.xlu0 %220
    %222 = vmax.xlane.f32.xlu0 %v168
    %v223 = vpop.xlane.xlu0 %222
    %224 = vmax.xlane.f32.xlu0 %v169
    %v225 = vpop.xlane.xlu0 %224
    %v226 = vsel %vm189, %v170, -inf
    %227 = vmax.xlane.f32.xlu0 %v226
    %v228 = vpop.xlane.xlu0 %227
    %229 = vmax.xlane.f32.xlu0 %v171
    %v230 = vpop.xlane.xlu0 %229
    %231 = vmax.xlane.f32.xlu0 %v172
    %v232 = vpop.xlane.xlu0 %231
    %233 = vmax.xlane.f32.xlu0 %v173
    %v234 = vpop.xlane.xlu0 %233
    %v235 = vsel %vm189, %v174, -inf
    %236 = vmax.xlane.f32.xlu0 %v235
    %v237 = vpop.xlane.xlu0 %236
    %238 = vmax.xlane.f32.xlu0 %v175
    %v239 = vpop.xlane.xlu0 %238
    %240 = vmax.xlane.f32.xlu0 %v176
    %v241 = vpop.xlane.xlu0 %240
    %242 = vmax.xlane.f32.xlu0 %v177
    %v243 = vpop.xlane.xlu0 %242
    %v244 = vsel %vm189, %v178, -inf
    %245 = vmax.xlane.f32.xlu0 %v244
    %v246 = vpop.xlane.xlu0 %245
    %247 = vmax.xlane.f32.xlu0 %v179
    %v248 = vpop.xlane.xlu0 %247
    %249 = vmax.xlane.f32.xlu0 %v180
    %v250 = vpop.xlane.xlu0 %249
    %251 = vmax.xlane.f32.xlu0 %v181
    %v252 = vpop.xlane.xlu0 %251
    %v253 = vsel %vm189, %v182, -inf
    %254 = vmax.xlane.f32.xlu0 %v253
    %v255 = vpop.xlane.xlu0 %254
    %v256 = vld [vmem:[#allocation4 + $0x8] sm:$0xff]
    %v257 = vld [vmem:[#allocation4 + $0x10] sm:$0xff]
    %259 = vset.pattern.permute.xlu0 8
    %260 = vperm.xlu0 %259, %v256
    %v261 = vpop.permute.xlu0 %260
    %264 = vset.pattern.permute.xlu0 8
    %265 = vperm.xlu0 %264, %v257
    %v266 = vpop.permute.xlu0 %265
    %v300 = vlaneseq
    %v301 = vand.u32 %v300, 127
    %v302 = vlaneseq
    %v303 = vshrl.u32 %v302, 7
    %v304 = vsub.s32 %v301, %v303
    %v305 = vrot.slane %v184, %v304
    %v306 = vadd.s32 %v301, 4294967288
    %v307 = vlaneseq
    %v308 = vshrl.u32 %v307, 7
    %v309 = vsub.s32 %v306, %v308
    %v310 = vrot.slane %v186, %v309
    %vm311 = vcmask 130112
    %v312 = vsel %vm311, %v310, %v305
    %v313 = vadd.s32 %v301, 4294967280
    %v314 = vlaneseq
    %v315 = vshrl.u32 %v314, 7
    %v316 = vsub.s32 %v313, %v315
    %v317 = vrot.slane %v188, %v316
    %vm318 = vcmask 195712
    %v319 = vsel %vm318, %v317, %v312
    %v320 = vadd.s32 %v301, 4294967272
    %v321 = vlaneseq
    %v322 = vshrl.u32 %v321, 7
    %v323 = vsub.s32 %v320, %v322
    %v324 = vrot.slane %v192, %v323
    %vm325 = vcmask 261312
    %v326 = vsel %vm325, %v324, %v319
    %v327 = vlaneseq
    %v328 = vshrl.u32 %v327, 7
    %v329 = vsub.s32 %v301, %v328
    %v330 = vrot.slane %v194, %v329
    %v331 = vlaneseq
    %v332 = vshrl.u32 %v331, 7
    %v333 = vsub.s32 %v306, %v332
    %v334 = vrot.slane %v196, %v333
    %v335 = vsel %vm311, %v334, %v330
    %v336 = vlaneseq
    %v337 = vshrl.u32 %v336, 7
    %v338 = vsub.s32 %v313, %v337
    %v339 = vrot.slane %v198, %v338
    %v340 = vsel %vm318, %v339, %v335
    %v341 = vlaneseq
    %v342 = vshrl.u32 %v341, 7
    %v343 = vsub.s32 %v320, %v342
    %v344 = vrot.slane %v201, %v343
    %v345 = vsel %vm325, %v344, %v340
    %v346 = vlaneseq
    %v347 = vshrl.u32 %v346, 7
    %v348 = vsub.s32 %v301, %v347
    %v349 = vrot.slane %v203, %v348
    %v350 = vlaneseq
    %v351 = vshrl.u32 %v350, 7
    %v352 = vsub.s32 %v306, %v351
    %v353 = vrot.slane %v205, %v352
    %v354 = vsel %vm311, %v353, %v349
    %v355 = vlaneseq
    %v356 = vshrl.u32 %v355, 7
    %v357 = vsub.s32 %v313, %v356
    %v358 = vrot.slane %v207, %v357
    %v359 = vsel %vm318, %v358, %v354
    %v360 = vlaneseq
    %v361 = vshrl.u32 %v360, 7
    %v362 = vsub.s32 %v320, %v361
    %v363 = vrot.slane %v210, %v362
    %v364 = vsel %vm325, %v363, %v359
    %v365 = vlaneseq
    %v366 = vshrl.u32 %v365, 7
    %v367 = vsub.s32 %v301, %v366
    %v368 = vrot.slane %v212, %v367
    %v369 = vlaneseq
    %v370 = vshrl.u32 %v369, 7
    %v371 = vsub.s32 %v306, %v370
    %v372 = vrot.slane %v214, %v371
    %v373 = vsel %vm311, %v372, %v368
    %v374 = vlaneseq
    %v375 = vshrl.u32 %v374, 7
    %v376 = vsub.s32 %v313, %v375
    %v377 = vrot.slane %v216, %v376
    %v378 = vsel %vm318, %v377, %v373
    %v379 = vlaneseq
    %v380 = vshrl.u32 %v379, 7
    %v381 = vsub.s32 %v320, %v380
    %v382 = vrot.slane %v219, %v381
    %v383 = vsel %vm325, %v382, %v378
    %v384 = vlaneseq
    %v385 = vshrl.u32 %v384, 7
    %v386 = vsub.s32 %v301, %v385
    %v387 = vrot.slane %v221, %v386
    %v388 = vlaneseq
    %v389 = vshrl.u32 %v388, 7
    %v390 = vsub.s32 %v306, %v389
    %v391 = vrot.slane %v223, %v390
    %v392 = vsel %vm311, %v391, %v387
    %v393 = vlaneseq
    %v394 = vshrl.u32 %v393, 7
    %v395 = vsub.s32 %v313, %v394
    %v396 = vrot.slane %v225, %v395
    %v397 = vsel %vm318, %v396, %v392
    %v398 = vlaneseq
    %v399 = vshrl.u32 %v398, 7
    %v400 = vsub.s32 %v320, %v399
    %v401 = vrot.slane %v228, %v400
    %v402 = vsel %vm325, %v401, %v397
    %v403 = vlaneseq
    %v404 = vshrl.u32 %v403, 7
    %v405 = vsub.s32 %v301, %v404
    %v406 = vrot.slane %v230, %v405
    %v407 = vlaneseq
    %v408 = vshrl.u32 %v407, 7
    %v409 = vsub.s32 %v306, %v408
    %v410 = vrot.slane %v232, %v409
    %v411 = vsel %vm311, %v410, %v406
    %v412 = vlaneseq
    %v413 = vshrl.u32 %v412, 7
    %v414 = vsub.s32 %v313, %v413
    %v415 = vrot.slane %v234, %v414
    %v416 = vsel %vm318, %v415, %v411
    %v417 = vlaneseq
    %v418 = vshrl.u32 %v417, 7
    %v419 = vsub.s32 %v320, %v418
    %v420 = vrot.slane %v237, %v419
    %v421 = vsel %vm325, %v420, %v416
    %v422 = vlaneseq
    %v423 = vshrl.u32 %v422, 7
    %v424 = vsub.s32 %v301, %v423
    %v425 = vrot.slane %v239, %v424
    %v426 = vlaneseq
    %v427 = vshrl.u32 %v426, 7
    %v428 = vsub.s32 %v306, %v427
    %v429 = vrot.slane %v241, %v428
    %v430 = vsel %vm311, %v429, %v425
    %v431 = vlaneseq
    %v432 = vshrl.u32 %v431, 7
    %v433 = vsub.s32 %v313, %v432
    %v434 = vrot.slane %v243, %v433
    %v435 = vsel %vm318, %v434, %v430
    %v436 = vlaneseq
    %v437 = vshrl.u32 %v436, 7
    %v438 = vsub.s32 %v320, %v437
    %v439 = vrot.slane %v246, %v438
    %v440 = vsel %vm325, %v439, %v435
    %v441 = vlaneseq
    %v442 = vshrl.u32 %v441, 7
    %v443 = vsub.s32 %v301, %v442
    %v444 = vrot.slane %v248, %v443
    %v445 = vlaneseq
    %v446 = vshrl.u32 %v445, 7
    %v447 = vsub.s32 %v306, %v446
    %v448 = vrot.slane %v250, %v447
    %v449 = vsel %vm311, %v448, %v444
    %v450 = vlaneseq
    %v451 = vshrl.u32 %v450, 7
    %v452 = vsub.s32 %v313, %v451
    %v453 = vrot.slane %v252, %v452
    %v454 = vsel %vm318, %v453, %v449
    %v455 = vlaneseq
    %v456 = vshrl.u32 %v455, 7
    %v457 = vsub.s32 %v320, %v456
    %v458 = vrot.slane %v255, %v457
    %v459 = vsel %vm325, %v458, %v454
    %vm460 = vcmask 1041409
    %v461 = vsel %vm460, %v345, %v326
    %vm462 = vcmask 1042434
    %v463 = vsel %vm462, %v364, %v461
    %vm464 = vcmask 1043459
    %v465 = vsel %vm464, %v383, %v463
    %vm466 = vcmask 1044484
    %v467 = vsel %vm466, %v402, %v465
    %vm468 = vcmask 1045509
    %v469 = vsel %vm468, %v421, %v467
    %vm470 = vcmask 1046534
    %v471 = vsel %vm470, %v440, %v469
    %vm472 = vcmask 1047559
    %v473 = vsel %vm472, %v459, %v471
    %vm475 = vcmask 64512
    %v476 = vsel %vm475, %v256, 0
    %v478 = vsel %vm475, %v257, 0
    %480 = vmatprep.subr.mxu0 0.0
    %481 = vmatpush1.msra.mxu0 0.0
    %482 = vmatprep.subr.mxu0 0.0
    %483 = vmatpush1.msra.mxu0 0.0
    %484 = vmatprep.subr.mxu0 0.0
    %485 = vmatpush1.msra.mxu0 0.0
    %486 = vmatprep.subr.mxu0 0.0
    %487 = vmatpush1.msra.mxu0 0.0
    %488 = vmatprep.subr.mxu0 0.0
    %489 = vmatpush1.msra.mxu0 0.0
    %490 = vmatprep.subr.mxu0 0.0
    %491 = vmatpush1.msra.mxu0 0.0
    %492 = vmatprep.subr.mxu0 0.0
    %493 = vmatpush1.msra.mxu0 0.0
    %494 = vmatprep.subr.mxu0 0.0
    %495 = vmatpush1.msra.mxu0 0.0
    %496 = vmatprep.subr.mxu0 0.0
    %497 = vmatpush1.msra.mxu0 0.0
    %498 = vmatprep.subr.mxu0 0.0
    %499 = vmatpush1.msra.mxu0 0.0
    %500 = vmatprep.subr.mxu0 0.0
    %501 = vmatpush1.msra.mxu0 0.0
    %502 = vmatprep.subr.mxu0 0.0
    %503 = vmatpush1.msra.mxu0 0.0
    %504 = vmatprep.subr.mxu0 0.0
    %505 = vmatpush1.msra.mxu0 0.0
    %506 = vmatprep.subr.mxu0 0.0
    %507 = vmatpush1.msra.mxu0 0.0
    %508 = vmatprep.subr.mxu0 0.0
    %509 = vmatpush1.msra.mxu0 0.0
    %510 = vmatprep.subr.mxu0 0.0
    %511 = vmatpush1.msra.mxu0 %v473
    %512 = vmatprep.subr.mxu0 0.0
    %513 = vmatpush2.msra.mxu0 0.0
    %514 = vmatprep.subr.mxu0 0.0
    %515 = vmatpush2.msra.mxu0 0.0
    %516 = vmatprep.subr.mxu0 0.0
    %517 = vmatpush2.msra.mxu0 0.0
    %518 = vmatprep.subr.mxu0 0.0
    %519 = vmatpush2.msra.mxu0 0.0
    %520 = vmatprep.subr.mxu0 0.0
    %521 = vmatpush2.msra.mxu0 0.0
    %522 = vmatprep.subr.mxu0 0.0
    %523 = vmatpush2.msra.mxu0 0.0
    %524 = vmatprep.subr.mxu0 0.0
    %525 = vmatpush2.msra.mxu0 0.0
    %526 = vmatprep.subr.mxu0 0.0
    %527 = vmatpush2.msra.mxu0 0.0
    %528 = vmatprep.subr.mxu0 0.0
    %529 = vmatpush2.msra.mxu0 0.0
    %530 = vmatprep.subr.mxu0 0.0
    %531 = vmatpush2.msra.mxu0 0.0
    %532 = vmatprep.subr.mxu0 0.0
    %533 = vmatpush2.msra.mxu0 0.0
    %534 = vmatprep.subr.mxu0 0.0
    %535 = vmatpush2.msra.mxu0 0.0
    %536 = vmatprep.subr.mxu0 0.0
    %537 = vmatpush2.msra.mxu0 0.0
    %538 = vmatprep.subr.mxu0 0.0
    %539 = vmatpush2.msra.mxu0 0.0
    %540 = vmatprep.subr.mxu0 0.0
    %541 = vmatpush2.msra.mxu0 0.0
    %542 = vmatprep.subr.mxu0 0.0
    %543 = vmatpush2.msra.mxu0 0.0
    %544 = vmatprep.mubr.f32.mxu0 0.0
    %545 = vmatmul.mubr.f32.gmra.mxu0 %v476
    %v546 = vpop.f32.mrf.mxu0
    %v547 = vadd.f32 %v261, %v546
    %v548 = vpop.f32.mrf.mxu0
    %549 = vmatprep.mubr.f32.mxu0 0.0
    %550 = vmatmul.mubr.f32.gmra.mxu0 %v478
    %v551 = vpop.f32.mrf.mxu0
    %v552 = vadd.f32 %v266, %v551
    %v553 = vpop.f32.mrf.mxu0
    %554 = vdwg.mxu0
    %v555 = vmax.f32 %v547, 0.0
    %v556 = vmax.f32 %v552, 0.0
    %v557 = vld [vmem:[#allocation4 + $0x78] sm:$0xff]
    %v558 = vld [vmem:[#allocation4 + $0x80] sm:$0xff]
    %v561 = vcombine.high %v555, %v555
    %v563 = vunpack.c.l.s4 1966171168
    %v564 = vunpack.c.0.s8 %v563
    %v565 = vlaneseq
    %v566 = vshrl.u32 %v565, 7
    %v567 = vsub.s32 %v564, %v566
    %v568 = vrot.slane %v555, %v567
    %v570 = vunpack.c.l.s4 1966171168
    %v571 = vunpack.c.0.s8 %v570
    %v572 = vlaneseq
    %v573 = vshrl.u32 %v572, 7
    %v574 = vsub.s32 %v571, %v573
    %v575 = vrot.slane %v561, %v574
    %v576 = vcombine.high %v568, %v568
    %v577 = vcombine.high %v575, %v575
    %v579 = vunpack.c.l.s4 1966171168
    %v580 = vunpack.c.0.s8 %v579
    %v581 = vlaneseq
    %v582 = vshrl.u32 %v581, 7
    %v583 = vsub.s32 %v580, %v582
    %v584 = vrot.slane %v568, %v583
    %v586 = vunpack.c.l.s4 1966171168
    %v587 = vunpack.c.0.s8 %v586
    %v588 = vlaneseq
    %v589 = vshrl.u32 %v588, 7
    %v590 = vsub.s32 %v587, %v589
    %v591 = vrot.slane %v575, %v590
    %v593 = vunpack.c.l.s4 1966171168
    %v594 = vunpack.c.0.s8 %v593
    %v595 = vlaneseq
    %v596 = vshrl.u32 %v595, 7
    %v597 = vsub.s32 %v594, %v596
    %v598 = vrot.slane %v576, %v597
    %v600 = vunpack.c.l.s4 1966171168
    %v601 = vunpack.c.0.s8 %v600
    %v602 = vlaneseq
    %v603 = vshrl.u32 %v602, 7
    %v604 = vsub.s32 %v601, %v603
    %v605 = vrot.slane %v577, %v604
    %v606 = vcombine.high %v584, %v584
    %v607 = vcombine.high %v591, %v591
    %v608 = vcombine.high %v598, %v598
    %v609 = vcombine.high %v605, %v605
    %v610 = vcombine.high %v556, %v556
    %v612 = vunpack.c.l.s4 1966171168
    %v613 = vunpack.c.0.s8 %v612
    %v614 = vlaneseq
    %v615 = vshrl.u32 %v614, 7
    %v616 = vsub.s32 %v613, %v615
    %v617 = vrot.slane %v556, %v616
    %v619 = vunpack.c.l.s4 1966171168
    %v620 = vunpack.c.0.s8 %v619
    %v621 = vlaneseq
    %v622 = vshrl.u32 %v621, 7
    %v623 = vsub.s32 %v620, %v622
    %v624 = vrot.slane %v610, %v623
    %v625 = vcombine.high %v617, %v617
    %v626 = vcombine.high %v624, %v624
    %v628 = vunpack.c.l.s4 1966171168
    %v629 = vunpack.c.0.s8 %v628
    %v630 = vlaneseq
    %v631 = vshrl.u32 %v630, 7
    %v632 = vsub.s32 %v629, %v631
    %v633 = vrot.slane %v617, %v632
    %v635 = vunpack.c.l.s4 1966171168
    %v636 = vunpack.c.0.s8 %v635
    %v637 = vlaneseq
    %v638 = vshrl.u32 %v637, 7
    %v639 = vsub.s32 %v636, %v638
    %v640 = vrot.slane %v624, %v639
    %v642 = vunpack.c.l.s4 1966171168
    %v643 = vunpack.c.0.s8 %v642
    %v644 = vlaneseq
    %v645 = vshrl.u32 %v644, 7
    %v646 = vsub.s32 %v643, %v645
    %v647 = vrot.slane %v625, %v646
    %v649 = vunpack.c.l.s4 1966171168
    %v650 = vunpack.c.0.s8 %v649
    %v651 = vlaneseq
    %v652 = vshrl.u32 %v651, 7
    %v653 = vsub.s32 %v650, %v652
    %v654 = vrot.slane %v626, %v653
    %v655 = vcombine.high %v633, %v633
    %v656 = vcombine.high %v640, %v640
    %v657 = vcombine.high %v647, %v647
    %v658 = vcombine.high %v654, %v654
    %v659 = vlaneseq
    %v660 = vshrl.u32 %v659, 7
    %v661 = vsub.s32 0, %v660
    %v662 = vrot.slane %v584, %v661
    %v663 = vlaneseq
    %v664 = vshrl.u32 %v663, 7
    %v665 = vsub.s32 0, %v664
    %v666 = vrot.slane %v598, %v665
    %v667 = vlaneseq
    %v668 = vshrl.u32 %v667, 7
    %v669 = vsub.s32 0, %v668
    %v670 = vrot.slane %v606, %v669
    %v671 = vlaneseq
    %v672 = vshrl.u32 %v671, 7
    %v673 = vsub.s32 0, %v672
    %v674 = vrot.slane %v608, %v673
    %v675 = vlaneseq
    %v676 = vshrl.u32 %v675, 7
    %v677 = vsub.s32 0, %v676
    %v678 = vrot.slane %v591, %v677
    %v679 = vlaneseq
    %v680 = vshrl.u32 %v679, 7
    %v681 = vsub.s32 0, %v680
    %v682 = vrot.slane %v605, %v681
    %v683 = vlaneseq
    %v684 = vshrl.u32 %v683, 7
    %v685 = vsub.s32 0, %v684
    %v686 = vrot.slane %v607, %v685
    %v687 = vlaneseq
    %v688 = vshrl.u32 %v687, 7
    %v689 = vsub.s32 0, %v688
    %v690 = vrot.slane %v609, %v689
    %v691 = vlaneseq
    %v692 = vshrl.u32 %v691, 7
    %v693 = vsub.s32 0, %v692
    %v694 = vrot.slane %v633, %v693
    %v695 = vlaneseq
    %v696 = vshrl.u32 %v695, 7
    %v697 = vsub.s32 0, %v696
    %v698 = vrot.slane %v647, %v697
    %v699 = vlaneseq
    %v700 = vshrl.u32 %v699, 7
    %v701 = vsub.s32 0, %v700
    %v702 = vrot.slane %v655, %v701
    %v703 = vlaneseq
    %v704 = vshrl.u32 %v703, 7
    %v705 = vsub.s32 0, %v704
    %v706 = vrot.slane %v657, %v705
    %v707 = vlaneseq
    %v708 = vshrl.u32 %v707, 7
    %v709 = vsub.s32 0, %v708
    %v710 = vrot.slane %v640, %v709
    %v711 = vlaneseq
    %v712 = vshrl.u32 %v711, 7
    %v713 = vsub.s32 0, %v712
    %v714 = vrot.slane %v654, %v713
    %v715 = vlaneseq
    %v716 = vshrl.u32 %v715, 7
    %v717 = vsub.s32 0, %v716
    %v718 = vrot.slane %v656, %v717
    %v719 = vlaneseq
    %v720 = vshrl.u32 %v719, 7
    %v721 = vsub.s32 0, %v720
    %v722 = vrot.slane %v658, %v721
    %v739 = vadd.f32 %v662, %v557
    %v740 = vadd.f32 %v662, %v558
    %v741 = vadd.f32 %v666, %v557
    %v742 = vadd.f32 %v666, %v558
    %v743 = vadd.f32 %v670, %v557
    %v744 = vadd.f32 %v670, %v558
    %v745 = vadd.f32 %v674, %v557
    %v746 = vadd.f32 %v674, %v558
    %v747 = vadd.f32 %v678, %v557
    %v748 = vadd.f32 %v678, %v558
    %v749 = vadd.f32 %v682, %v557
    %v750 = vadd.f32 %v682, %v558
    %v751 = vadd.f32 %v686, %v557
    %v752 = vadd.f32 %v686, %v558
    %v753 = vadd.f32 %v690, %v557
    %v754 = vadd.f32 %v690, %v558
    %v755 = vadd.f32 %v694, %v557
    %v756 = vadd.f32 %v694, %v558
    %v757 = vadd.f32 %v698, %v557
    %v758 = vadd.f32 %v698, %v558
    %v759 = vadd.f32 %v702, %v557
    %v760 = vadd.f32 %v702, %v558
    %v761 = vadd.f32 %v706, %v557
    %v762 = vadd.f32 %v706, %v558
    %v763 = vadd.f32 %v710, %v557
    %v764 = vadd.f32 %v710, %v558
    %v765 = vadd.f32 %v714, %v557
    %v766 = vadd.f32 %v714, %v558
    %v767 = vadd.f32 %v718, %v557
    %v768 = vadd.f32 %v718, %v558
    %v769 = vadd.f32 %v722, %v557
    %v770 = vadd.f32 %v722, %v558
    %vm771 = vcmask 244736
    %v772 = vsel %vm771, %v739, -inf
    %773 = vmax.xlane.f32.xlu0 %v772
    %v774 = vpop.xlane.xlu0 %773
    %v775 = vsel %vm771, %v740, -inf
    %776 = vmax.xlane.f32.xlu0 %v775
    %v777 = vpop.xlane.xlu0 %776
    %v778 = vsel %vm771, %v741, -inf
    %779 = vmax.xlane.f32.xlu0 %v778
    %v780 = vpop.xlane.xlu0 %779
    %v781 = vsel %vm771, %v742, -inf
    %782 = vmax.xlane.f32.xlu0 %v781
    %v783 = vpop.xlane.xlu0 %782
    %v784 = vsel %vm771, %v743, -inf
    %785 = vmax.xlane.f32.xlu0 %v784
    %v786 = vpop.xlane.xlu0 %785
    %v787 = vsel %vm771, %v744, -inf
    %788 = vmax.xlane.f32.xlu0 %v787
    %v789 = vpop.xlane.xlu0 %788
    %v790 = vsel %vm771, %v745, -inf
    %791 = vmax.xlane.f32.xlu0 %v790
    %v792 = vpop.xlane.xlu0 %791
    %v793 = vsel %vm771, %v746, -inf
    %794 = vmax.xlane.f32.xlu0 %v793
    %v795 = vpop.xlane.xlu0 %794
    %v796 = vsel %vm771, %v747, -inf
    %797 = vmax.xlane.f32.xlu0 %v796
    %v798 = vpop.xlane.xlu0 %797
    %v799 = vsel %vm771, %v748, -inf
    %800 = vmax.xlane.f32.xlu0 %v799
    %v801 = vpop.xlane.xlu0 %800
    %v802 = vsel %vm771, %v749, -inf
    %803 = vmax.xlane.f32.xlu0 %v802
    %v804 = vpop.xlane.xlu0 %803
    %v805 = vsel %vm771, %v750, -inf
    %806 = vmax.xlane.f32.xlu0 %v805
    %v807 = vpop.xlane.xlu0 %806
    %v808 = vsel %vm771, %v751, -inf
    %809 = vmax.xlane.f32.xlu0 %v808
    %v810 = vpop.xlane.xlu0 %809
    %v811 = vsel %vm771, %v752, -inf
    %812 = vmax.xlane.f32.xlu0 %v811
    %v813 = vpop.xlane.xlu0 %812
    %v814 = vsel %vm771, %v753, -inf
    %815 = vmax.xlane.f32.xlu0 %v814
    %v816 = vpop.xlane.xlu0 %815
    %v817 = vsel %vm771, %v754, -inf
    %818 = vmax.xlane.f32.xlu0 %v817
    %v819 = vpop.xlane.xlu0 %818
    %v820 = vsel %vm771, %v755, -inf
    %821 = vmax.xlane.f32.xlu0 %v820
    %v822 = vpop.xlane.xlu0 %821
    %v823 = vsel %vm771, %v756, -inf
    %824 = vmax.xlane.f32.xlu0 %v823
    %v825 = vpop.xlane.xlu0 %824
    %v826 = vsel %vm771, %v757, -inf
    %827 = vmax.xlane.f32.xlu0 %v826
    %v828 = vpop.xlane.xlu0 %827
    %v829 = vsel %vm771, %v758, -inf
    %830 = vmax.xlane.f32.xlu0 %v829
    %v831 = vpop.xlane.xlu0 %830
    %v832 = vsel %vm771, %v759, -inf
    %833 = vmax.xlane.f32.xlu0 %v832
    %v834 = vpop.xlane.xlu0 %833
    %v835 = vsel %vm771, %v760, -inf
    %836 = vmax.xlane.f32.xlu0 %v835
    %v837 = vpop.xlane.xlu0 %836
    %v838 = vsel %vm771, %v761, -inf
    %839 = vmax.xlane.f32.xlu0 %v838
    %v840 = vpop.xlane.xlu0 %839
    %v841 = vsel %vm771, %v762, -inf
    %842 = vmax.xlane.f32.xlu0 %v841
    %v843 = vpop.xlane.xlu0 %842
    %v844 = vsel %vm771, %v763, -inf
    %845 = vmax.xlane.f32.xlu0 %v844
    %v846 = vpop.xlane.xlu0 %845
    %v847 = vsel %vm771, %v764, -inf
    %848 = vmax.xlane.f32.xlu0 %v847
    %v849 = vpop.xlane.xlu0 %848
    %v850 = vsel %vm771, %v765, -inf
    %851 = vmax.xlane.f32.xlu0 %v850
    %v852 = vpop.xlane.xlu0 %851
    %v853 = vsel %vm771, %v766, -inf
    %854 = vmax.xlane.f32.xlu0 %v853
    %v855 = vpop.xlane.xlu0 %854
    %v856 = vsel %vm771, %v767, -inf
    %857 = vmax.xlane.f32.xlu0 %v856
    %v858 = vpop.xlane.xlu0 %857
    %v859 = vsel %vm771, %v768, -inf
    %860 = vmax.xlane.f32.xlu0 %v859
    %v861 = vpop.xlane.xlu0 %860
    %v862 = vsel %vm771, %v769, -inf
    %863 = vmax.xlane.f32.xlu0 %v862
    %v864 = vpop.xlane.xlu0 %863
    %v865 = vsel %vm771, %v770, -inf
    %866 = vmax.xlane.f32.xlu0 %v865
    %v867 = vpop.xlane.xlu0 %866
    %v868 = vld [vmem:[#allocation4 + $0x18] sm:$0xff]
    %v869 = vld [vmem:[#allocation4 + $0x20] sm:$0xff]
    %v870 = vld [vmem:[#allocation4 + $0x28] sm:$0xff]
    %v871 = vld [vmem:[#allocation4 + $0x30] sm:$0xff]
    %873 = vset.pattern.permute.xlu0 16
    %874 = vperm.xlu0 %873, %v868
    %v875 = vpop.permute.xlu0 %874
    %878 = vset.pattern.permute.xlu0 16
    %879 = vperm.xlu0 %878, %v869
    %v880 = vpop.permute.xlu0 %879
    %883 = vset.pattern.permute.xlu0 16
    %884 = vperm.xlu0 %883, %v870
    %v885 = vpop.permute.xlu0 %884
    %888 = vset.pattern.permute.xlu0 16
    %889 = vperm.xlu0 %888, %v871
    %v890 = vpop.permute.xlu0 %889
    %v924 = vlaneseq
    %v925 = vshrl.u32 %v924, 7
    %v926 = vsub.s32 %v301, %v925
    %v927 = vrot.slane %v774, %v926
    %v928 = vlaneseq
    %v929 = vshrl.u32 %v928, 7
    %v930 = vsub.s32 %v306, %v929
    %v931 = vrot.slane %v777, %v930
    %v932 = vsel %vm311, %v931, %v927
    %v933 = vlaneseq
    %v934 = vshrl.u32 %v933, 7
    %v935 = vsub.s32 %v301, %v934
    %v936 = vrot.slane %v780, %v935
    %v937 = vlaneseq
    %v938 = vshrl.u32 %v937, 7
    %v939 = vsub.s32 %v306, %v938
    %v940 = vrot.slane %v783, %v939
    %v941 = vsel %vm311, %v940, %v936
    %v942 = vlaneseq
    %v943 = vshrl.u32 %v942, 7
    %v944 = vsub.s32 %v301, %v943
    %v945 = vrot.slane %v786, %v944
    %v946 = vlaneseq
    %v947 = vshrl.u32 %v946, 7
    %v948 = vsub.s32 %v306, %v947
    %v949 = vrot.slane %v789, %v948
    %v950 = vsel %vm311, %v949, %v945
    %v951 = vlaneseq
    %v952 = vshrl.u32 %v951, 7
    %v953 = vsub.s32 %v301, %v952
    %v954 = vrot.slane %v792, %v953
    %v955 = vlaneseq
    %v956 = vshrl.u32 %v955, 7
    %v957 = vsub.s32 %v306, %v956
    %v958 = vrot.slane %v795, %v957
    %v959 = vsel %vm311, %v958, %v954
    %v960 = vlaneseq
    %v961 = vshrl.u32 %v960, 7
    %v962 = vsub.s32 %v301, %v961
    %v963 = vrot.slane %v798, %v962
    %v964 = vlaneseq
    %v965 = vshrl.u32 %v964, 7
    %v966 = vsub.s32 %v306, %v965
    %v967 = vrot.slane %v801, %v966
    %v968 = vsel %vm311, %v967, %v963
    %v969 = vlaneseq
    %v970 = vshrl.u32 %v969, 7
    %v971 = vsub.s32 %v301, %v970
    %v972 = vrot.slane %v804, %v971
    %v973 = vlaneseq
    %v974 = vshrl.u32 %v973, 7
    %v975 = vsub.s32 %v306, %v974
    %v976 = vrot.slane %v807, %v975
    %v977 = vsel %vm311, %v976, %v972
    %v978 = vlaneseq
    %v979 = vshrl.u32 %v978, 7
    %v980 = vsub.s32 %v301, %v979
    %v981 = vrot.slane %v810, %v980
    %v982 = vlaneseq
    %v983 = vshrl.u32 %v982, 7
    %v984 = vsub.s32 %v306, %v983
    %v985 = vrot.slane %v813, %v984
    %v986 = vsel %vm311, %v985, %v981
    %v987 = vlaneseq
    %v988 = vshrl.u32 %v987, 7
    %v989 = vsub.s32 %v301, %v988
    %v990 = vrot.slane %v816, %v989
    %v991 = vlaneseq
    %v992 = vshrl.u32 %v991, 7
    %v993 = vsub.s32 %v306, %v992
    %v994 = vrot.slane %v819, %v993
    %v995 = vsel %vm311, %v994, %v990
    %v996 = vlaneseq
    %v997 = vshrl.u32 %v996, 7
    %v998 = vsub.s32 %v301, %v997
    %v999 = vrot.slane %v822, %v998
    %v1000 = vlaneseq
    %v1001 = vshrl.u32 %v1000, 7
    %v1002 = vsub.s32 %v306, %v1001
    %v1003 = vrot.slane %v825, %v1002
    %v1004 = vsel %vm311, %v1003, %v999
    %v1005 = vlaneseq
    %v1006 = vshrl.u32 %v1005, 7
    %v1007 = vsub.s32 %v301, %v1006
    %v1008 = vrot.slane %v828, %v1007
    %v1009 = vlaneseq
    %v1010 = vshrl.u32 %v1009, 7
    %v1011 = vsub.s32 %v306, %v1010
    %v1012 = vrot.slane %v831, %v1011
    %v1013 = vsel %vm311, %v1012, %v1008
    %v1014 = vlaneseq
    %v1015 = vshrl.u32 %v1014, 7
    %v1016 = vsub.s32 %v301, %v1015
    %v1017 = vrot.slane %v834, %v1016
    %v1018 = vlaneseq
    %v1019 = vshrl.u32 %v1018, 7
    %v1020 = vsub.s32 %v306, %v1019
    %v1021 = vrot.slane %v837, %v1020
    %v1022 = vsel %vm311, %v1021, %v1017
    %v1023 = vlaneseq
    %v1024 = vshrl.u32 %v1023, 7
    %v1025 = vsub.s32 %v301, %v1024
    %v1026 = vrot.slane %v840, %v1025
    %v1027 = vlaneseq
    %v1028 = vshrl.u32 %v1027, 7
    %v1029 = vsub.s32 %v306, %v1028
    %v1030 = vrot.slane %v843, %v1029
    %v1031 = vsel %vm311, %v1030, %v1026
    %v1032 = vlaneseq
    %v1033 = vshrl.u32 %v1032, 7
    %v1034 = vsub.s32 %v301, %v1033
    %v1035 = vrot.slane %v846, %v1034
    %v1036 = vlaneseq
    %v1037 = vshrl.u32 %v1036, 7
    %v1038 = vsub.s32 %v306, %v1037
    %v1039 = vrot.slane %v849, %v1038
    %v1040 = vsel %vm311, %v1039, %v1035
    %v1041 = vlaneseq
    %v1042 = vshrl.u32 %v1041, 7
    %v1043 = vsub.s32 %v301, %v1042
    %v1044 = vrot.slane %v852, %v1043
    %v1045 = vlaneseq
    %v1046 = vshrl.u32 %v1045, 7
    %v1047 = vsub.s32 %v306, %v1046
    %v1048 = vrot.slane %v855, %v1047
    %v1049 = vsel %vm311, %v1048, %v1044
    %v1050 = vlaneseq
    %v1051 = vshrl.u32 %v1050, 7
    %v1052 = vsub.s32 %v301, %v1051
    %v1053 = vrot.slane %v858, %v1052
    %v1054 = vlaneseq
    %v1055 = vshrl.u32 %v1054, 7
    %v1056 = vsub.s32 %v306, %v1055
    %v1057 = vrot.slane %v861, %v1056
    %v1058 = vsel %vm311, %v1057, %v1053
    %v1059 = vlaneseq
    %v1060 = vshrl.u32 %v1059, 7
    %v1061 = vsub.s32 %v301, %v1060
    %v1062 = vrot.slane %v864, %v1061
    %v1063 = vlaneseq
    %v1064 = vshrl.u32 %v1063, 7
    %v1065 = vsub.s32 %v306, %v1064
    %v1066 = vrot.slane %v867, %v1065
    %v1067 = vsel %vm311, %v1066, %v1062
    %v1068 = vsel %vm460, %v941, %v932
    %v1069 = vsel %vm462, %v950, %v1068
    %v1070 = vsel %vm464, %v959, %v1069
    %v1071 = vsel %vm466, %v968, %v1070
    %v1072 = vsel %vm468, %v977, %v1071
    %v1073 = vsel %vm470, %v986, %v1072
    %v1074 = vsel %vm472, %v995, %v1073
    %v1075 = vsel %vm460, %v1013, %v1004
    %v1076 = vsel %vm462, %v1022, %v1075
    %v1077 = vsel %vm464, %v1031, %v1076
    %v1078 = vsel %vm466, %v1040, %v1077
    %v1079 = vsel %vm468, %v1049, %v1078
    %v1080 = vsel %vm470, %v1058, %v1079
    %v1081 = vsel %vm472, %v1067, %v1080
    %vm1084 = vcmask 130048
    %v1085 = vsel %vm1084, %v868, 0
    %v1087 = vsel %vm1084, %v869, 0
    %v1089 = vsel %vm1084, %v870, 0
    %v1091 = vsel %vm1084, %v871, 0
    %1093 = vmatprep.subr.mxu0 0.0
    %1094 = vmatpush1.msra.mxu0 0.0
    %1095 = vmatprep.subr.mxu0 0.0
    %1096 = vmatpush1.msra.mxu0 0.0
    %1097 = vmatprep.subr.mxu0 0.0
    %1098 = vmatpush1.msra.mxu0 0.0
    %1099 = vmatprep.subr.mxu0 0.0
    %1100 = vmatpush1.msra.mxu0 0.0
    %1101 = vmatprep.subr.mxu0 0.0
    %1102 = vmatpush1.msra.mxu0 0.0
    %1103 = vmatprep.subr.mxu0 0.0
    %1104 = vmatpush1.msra.mxu0 0.0
    %1105 = vmatprep.subr.mxu0 0.0
    %1106 = vmatpush1.msra.mxu0 0.0
    %1107 = vmatprep.subr.mxu0 0.0
    %1108 = vmatpush1.msra.mxu0 0.0
    %1109 = vmatprep.subr.mxu0 0.0
    %1110 = vmatpush1.msra.mxu0 0.0
    %1111 = vmatprep.subr.mxu0 0.0
    %1112 = vmatpush1.msra.mxu0 0.0
    %1113 = vmatprep.subr.mxu0 0.0
    %1114 = vmatpush1.msra.mxu0 0.0
    %1115 = vmatprep.subr.mxu0 0.0
    %1116 = vmatpush1.msra.mxu0 0.0
    %1117 = vmatprep.subr.mxu0 0.0
    %1118 = vmatpush1.msra.mxu0 0.0
    %1119 = vmatprep.subr.mxu0 0.0
    %1120 = vmatpush1.msra.mxu0 0.0
    %1121 = vmatprep.subr.mxu0 0.0
    %1122 = vmatpush1.msra.mxu0 %v1081
    %1123 = vmatprep.subr.mxu0 0.0
    %1124 = vmatpush1.msra.mxu0 %v1074
    %1125 = vmatprep.subr.mxu0 0.0
    %1126 = vmatpush2.msra.mxu0 0.0
    %1127 = vmatprep.subr.mxu0 0.0
    %1128 = vmatpush2.msra.mxu0 0.0
    %1129 = vmatprep.subr.mxu0 0.0
    %1130 = vmatpush2.msra.mxu0 0.0
    %1131 = vmatprep.subr.mxu0 0.0
    %1132 = vmatpush2.msra.mxu0 0.0
    %1133 = vmatprep.subr.mxu0 0.0
    %1134 = vmatpush2.msra.mxu0 0.0
    %1135 = vmatprep.subr.mxu0 0.0
    %1136 = vmatpush2.msra.mxu0 0.0
    %1137 = vmatprep.subr.mxu0 0.0
    %1138 = vmatpush2.msra.mxu0 0.0
    %1139 = vmatprep.subr.mxu0 0.0
    %1140 = vmatpush2.msra.mxu0 0.0
    %1141 = vmatprep.subr.mxu0 0.0
    %1142 = vmatpush2.msra.mxu0 0.0
    %1143 = vmatprep.subr.mxu0 0.0
    %1144 = vmatpush2.msra.mxu0 0.0
    %1145 = vmatprep.subr.mxu0 0.0
    %1146 = vmatpush2.msra.mxu0 0.0
    %1147 = vmatprep.subr.mxu0 0.0
    %1148 = vmatpush2.msra.mxu0 0.0
    %1149 = vmatprep.subr.mxu0 0.0
    %1150 = vmatpush2.msra.mxu0 0.0
    %1151 = vmatprep.subr.mxu0 0.0
    %1152 = vmatpush2.msra.mxu0 0.0
    %1153 = vmatprep.subr.mxu0 0.0
    %1154 = vmatpush2.msra.mxu0 0.0
    %1155 = vmatprep.subr.mxu0 0.0
    %1156 = vmatpush2.msra.mxu0 0.0
    %1157 = vmatprep.mubr.f32.mxu0 0.0
    %1158 = vmatmul.mubr.f32.gmra.mxu0 %v1085
    %v1159 = vpop.f32.mrf.mxu0
    %v1160 = vadd.f32 %v875, %v1159
    %v1161 = vpop.f32.mrf.mxu0
    %1162 = vmatprep.mubr.f32.mxu0 0.0
    %1163 = vmatmul.mubr.f32.gmra.mxu0 %v1087
    %v1164 = vpop.f32.mrf.mxu0
    %v1165 = vadd.f32 %v880, %v1164
    %v1166 = vpop.f32.mrf.mxu0
    %1167 = vmatprep.mubr.f32.mxu0 0.0
    %1168 = vmatmul.mubr.f32.gmra.mxu0 %v1089
    %v1169 = vpop.f32.mrf.mxu0
    %v1170 = vadd.f32 %v885, %v1169
    %v1171 = vpop.f32.mrf.mxu0
    %1172 = vmatprep.mubr.f32.mxu0 0.0
    %1173 = vmatmul.mubr.f32.gmra.mxu0 %v1091
    %v1174 = vpop.f32.mrf.mxu0
    %v1175 = vadd.f32 %v890, %v1174
    %v1176 = vpop.f32.mrf.mxu0
    %1177 = vdwg.mxu0
    %v1178 = vmax.f32 %v1160, 0.0
    %v1179 = vmax.f32 %v1165, 0.0
    %v1180 = vmax.f32 %v1170, 0.0
    %v1181 = vmax.f32 %v1175, 0.0
    %v1182 = vld [vmem:[#allocation4 + $0x88] sm:$0xff]
    %v1187 = vcombine.high %v1178, %v1178
    %v1189 = vunpack.c.l.s4 1966171168
    %v1190 = vunpack.c.0.s8 %v1189
    %v1191 = vlaneseq
    %v1192 = vshrl.u32 %v1191, 7
    %v1193 = vsub.s32 %v1190, %v1192
    %v1194 = vrot.slane %v1178, %v1193
    %v1196 = vunpack.c.l.s4 1966171168
    %v1197 = vunpack.c.0.s8 %v1196
    %v1198 = vlaneseq
    %v1199 = vshrl.u32 %v1198, 7
    %v1200 = vsub.s32 %v1197, %v1199
    %v1201 = vrot.slane %v1187, %v1200
    %v1202 = vcombine.high %v1194, %v1194
    %v1203 = vcombine.high %v1201, %v1201
    %v1205 = vunpack.c.l.s4 1966171168
    %v1206 = vunpack.c.0.s8 %v1205
    %v1207 = vlaneseq
    %v1208 = vshrl.u32 %v1207, 7
    %v1209 = vsub.s32 %v1206, %v1208
    %v1210 = vrot.slane %v1194, %v1209
    %v1212 = vunpack.c.l.s4 1966171168
    %v1213 = vunpack.c.0.s8 %v1212
    %v1214 = vlaneseq
    %v1215 = vshrl.u32 %v1214, 7
    %v1216 = vsub.s32 %v1213, %v1215
    %v1217 = vrot.slane %v1201, %v1216
    %v1219 = vunpack.c.l.s4 1966171168
    %v1220 = vunpack.c.0.s8 %v1219
    %v1221 = vlaneseq
    %v1222 = vshrl.u32 %v1221, 7
    %v1223 = vsub.s32 %v1220, %v1222
    %v1224 = vrot.slane %v1202, %v1223
    %v1226 = vunpack.c.l.s4 1966171168
    %v1227 = vunpack.c.0.s8 %v1226
    %v1228 = vlaneseq
    %v1229 = vshrl.u32 %v1228, 7
    %v1230 = vsub.s32 %v1227, %v1229
    %v1231 = vrot.slane %v1203, %v1230
    %v1232 = vcombine.high %v1210, %v1210
    %v1233 = vcombine.high %v1217, %v1217
    %v1234 = vcombine.high %v1224, %v1224
    %v1235 = vcombine.high %v1231, %v1231
    %v1236 = vcombine.high %v1179, %v1179
    %v1238 = vunpack.c.l.s4 1966171168
    %v1239 = vunpack.c.0.s8 %v1238
    %v1240 = vlaneseq
    %v1241 = vshrl.u32 %v1240, 7
    %v1242 = vsub.s32 %v1239, %v1241
    %v1243 = vrot.slane %v1179, %v1242
    %v1245 = vunpack.c.l.s4 1966171168
    %v1246 = vunpack.c.0.s8 %v1245
    %v1247 = vlaneseq
    %v1248 = vshrl.u32 %v1247, 7
    %v1249 = vsub.s32 %v1246, %v1248
    %v1250 = vrot.slane %v1236, %v1249
    %v1251 = vcombine.high %v1243, %v1243
    %v1252 = vcombine.high %v1250, %v1250
    %v1254 = vunpack.c.l.s4 1966171168
    %v1255 = vunpack.c.0.s8 %v1254
    %v1256 = vlaneseq
    %v1257 = vshrl.u32 %v1256, 7
    %v1258 = vsub.s32 %v1255, %v1257
    %v1259 = vrot.slane %v1243, %v1258
    %v1261 = vunpack.c.l.s4 1966171168
    %v1262 = vunpack.c.0.s8 %v1261
    %v1263 = vlaneseq
    %v1264 = vshrl.u32 %v1263, 7
    %v1265 = vsub.s32 %v1262, %v1264
    %v1266 = vrot.slane %v1250, %v1265
    %v1268 = vunpack.c.l.s4 1966171168
    %v1269 = vunpack.c.0.s8 %v1268
    %v1270 = vlaneseq
    %v1271 = vshrl.u32 %v1270, 7
    %v1272 = vsub.s32 %v1269, %v1271
    %v1273 = vrot.slane %v1251, %v1272
    %v1275 = vunpack.c.l.s4 1966171168
    %v1276 = vunpack.c.0.s8 %v1275
    %v1277 = vlaneseq
    %v1278 = vshrl.u32 %v1277, 7
    %v1279 = vsub.s32 %v1276, %v1278
    %v1280 = vrot.slane %v1252, %v1279
    %v1281 = vcombine.high %v1259, %v1259
    %v1282 = vcombine.high %v1266, %v1266
    %v1283 = vcombine.high %v1273, %v1273
    %v1284 = vcombine.high %v1280, %v1280
    %v1285 = vcombine.high %v1180, %v1180
    %v1287 = vunpack.c.l.s4 1966171168
    %v1288 = vunpack.c.0.s8 %v1287
    %v1289 = vlaneseq
    %v1290 = vshrl.u32 %v1289, 7
    %v1291 = vsub.s32 %v1288, %v1290
    %v1292 = vrot.slane %v1180, %v1291
    %v1294 = vunpack.c.l.s4 1966171168
    %v1295 = vunpack.c.0.s8 %v1294
    %v1296 = vlaneseq
    %v1297 = vshrl.u32 %v1296, 7
    %v1298 = vsub.s32 %v1295, %v1297
    %v1299 = vrot.slane %v1285, %v1298
    %v1300 = vcombine.high %v1292, %v1292
    %v1301 = vcombine.high %v1299, %v1299
    %v1303 = vunpack.c.l.s4 1966171168
    %v1304 = vunpack.c.0.s8 %v1303
    %v1305 = vlaneseq
    %v1306 = vshrl.u32 %v1305, 7
    %v1307 = vsub.s32 %v1304, %v1306
    %v1308 = vrot.slane %v1292, %v1307
    %v1310 = vunpack.c.l.s4 1966171168
    %v1311 = vunpack.c.0.s8 %v1310
    %v1312 = vlaneseq
    %v1313 = vshrl.u32 %v1312, 7
    %v1314 = vsub.s32 %v1311, %v1313
    %v1315 = vrot.slane %v1299, %v1314
    %v1317 = vunpack.c.l.s4 1966171168
    %v1318 = vunpack.c.0.s8 %v1317
    %v1319 = vlaneseq
    %v1320 = vshrl.u32 %v1319, 7
    %v1321 = vsub.s32 %v1318, %v1320
    %v1322 = vrot.slane %v1300, %v1321
    %v1324 = vunpack.c.l.s4 1966171168
    %v1325 = vunpack.c.0.s8 %v1324
    %v1326 = vlaneseq
    %v1327 = vshrl.u32 %v1326, 7
    %v1328 = vsub.s32 %v1325, %v1327
    %v1329 = vrot.slane %v1301, %v1328
    %v1330 = vcombine.high %v1308, %v1308
    %v1331 = vcombine.high %v1315, %v1315
    %v1332 = vcombine.high %v1322, %v1322
    %v1333 = vcombine.high %v1329, %v1329
    %v1334 = vcombine.high %v1181, %v1181
    %v1336 = vunpack.c.l.s4 1966171168
    %v1337 = vunpack.c.0.s8 %v1336
    %v1338 = vlaneseq
    %v1339 = vshrl.u32 %v1338, 7
    %v1340 = vsub.s32 %v1337, %v1339
    %v1341 = vrot.slane %v1181, %v1340
    %v1343 = vunpack.c.l.s4 1966171168
    %v1344 = vunpack.c.0.s8 %v1343
    %v1345 = vlaneseq
    %v1346 = vshrl.u32 %v1345, 7
    %v1347 = vsub.s32 %v1344, %v1346
    %v1348 = vrot.slane %v1334, %v1347
    %v1349 = vcombine.high %v1341, %v1341
    %v1350 = vcombine.high %v1348, %v1348
    %v1352 = vunpack.c.l.s4 1966171168
    %v1353 = vunpack.c.0.s8 %v1352
    %v1354 = vlaneseq
    %v1355 = vshrl.u32 %v1354, 7
    %v1356 = vsub.s32 %v1353, %v1355
    %v1357 = vrot.slane %v1341, %v1356
    %v1359 = vunpack.c.l.s4 1966171168
    %v1360 = vunpack.c.0.s8 %v1359
    %v1361 = vlaneseq
    %v1362 = vshrl.u32 %v1361, 7
    %v1363 = vsub.s32 %v1360, %v1362
    %v1364 = vrot.slane %v1348, %v1363
    %v1366 = vunpack.c.l.s4 1966171168
    %v1367 = vunpack.c.0.s8 %v1366
    %v1368 = vlaneseq
    %v1369 = vshrl.u32 %v1368, 7
    %v1370 = vsub.s32 %v1367, %v1369
    %v1371 = vrot.slane %v1349, %v1370
    %v1373 = vunpack.c.l.s4 1966171168
    %v1374 = vunpack.c.0.s8 %v1373
    %v1375 = vlaneseq
    %v1376 = vshrl.u32 %v1375, 7
    %v1377 = vsub.s32 %v1374, %v1376
    %v1378 = vrot.slane %v1350, %v1377
    %v1379 = vcombine.high %v1357, %v1357
    %v1380 = vcombine.high %v1364, %v1364
    %v1381 = vcombine.high %v1371, %v1371
    %v1382 = vcombine.high %v1378, %v1378
    %v1383 = vlaneseq
    %v1384 = vshrl.u32 %v1383, 7
    %v1385 = vsub.s32 0, %v1384
    %v1386 = vrot.slane %v1210, %v1385
    %v1387 = vlaneseq
    %v1388 = vshrl.u32 %v1387, 7
    %v1389 = vsub.s32 0, %v1388
    %v1390 = vrot.slane %v1224, %v1389
    %v1391 = vlaneseq
    %v1392 = vshrl.u32 %v1391, 7
    %v1393 = vsub.s32 0, %v1392
    %v1394 = vrot.slane %v1232, %v1393
    %v1395 = vlaneseq
    %v1396 = vshrl.u32 %v1395, 7
    %v1397 = vsub.s32 0, %v1396
    %v1398 = vrot.slane %v1234, %v1397
    %v1399 = vlaneseq
    %v1400 = vshrl.u32 %v1399, 7
    %v1401 = vsub.s32 0, %v1400
    %v1402 = vrot.slane %v1217, %v1401
    %v1403 = vlaneseq
    %v1404 = vshrl.u32 %v1403, 7
    %v1405 = vsub.s32 0, %v1404
    %v1406 = vrot.slane %v1231, %v1405
    %v1407 = vlaneseq
    %v1408 = vshrl.u32 %v1407, 7
    %v1409 = vsub.s32 0, %v1408
    %v1410 = vrot.slane %v1233, %v1409
    %v1411 = vlaneseq
    %v1412 = vshrl.u32 %v1411, 7
    %v1413 = vsub.s32 0, %v1412
    %v1414 = vrot.slane %v1235, %v1413
    %v1415 = vlaneseq
    %v1416 = vshrl.u32 %v1415, 7
    %v1417 = vsub.s32 0, %v1416
    %v1418 = vrot.slane %v1259, %v1417
    %v1419 = vlaneseq
    %v1420 = vshrl.u32 %v1419, 7
    %v1421 = vsub.s32 0, %v1420
    %v1422 = vrot.slane %v1273, %v1421
    %v1423 = vlaneseq
    %v1424 = vshrl.u32 %v1423, 7
    %v1425 = vsub.s32 0, %v1424
    %v1426 = vrot.slane %v1281, %v1425
    %v1427 = vlaneseq
    %v1428 = vshrl.u32 %v1427, 7
    %v1429 = vsub.s32 0, %v1428
    %v1430 = vrot.slane %v1283, %v1429
    %v1431 = vlaneseq
    %v1432 = vshrl.u32 %v1431, 7
    %v1433 = vsub.s32 0, %v1432
    %v1434 = vrot.slane %v1266, %v1433
    %v1435 = vlaneseq
    %v1436 = vshrl.u32 %v1435, 7
    %v1437 = vsub.s32 0, %v1436
    %v1438 = vrot.slane %v1280, %v1437
    %v1439 = vlaneseq
    %v1440 = vshrl.u32 %v1439, 7
    %v1441 = vsub.s32 0, %v1440
    %v1442 = vrot.slane %v1282, %v1441
    %v1443 = vlaneseq
    %v1444 = vshrl.u32 %v1443, 7
    %v1445 = vsub.s32 0, %v1444
    %v1446 = vrot.slane %v1284, %v1445
    %v1447 = vlaneseq
    %v1448 = vshrl.u32 %v1447, 7
    %v1449 = vsub.s32 0, %v1448
    %v1450 = vrot.slane %v1308, %v1449
    %v1451 = vlaneseq
    %v1452 = vshrl.u32 %v1451, 7
    %v1453 = vsub.s32 0, %v1452
    %v1454 = vrot.slane %v1322, %v1453
    %v1455 = vlaneseq
    %v1456 = vshrl.u32 %v1455, 7
    %v1457 = vsub.s32 0, %v1456
    %v1458 = vrot.slane %v1330, %v1457
    %v1459 = vlaneseq
    %v1460 = vshrl.u32 %v1459, 7
    %v1461 = vsub.s32 0, %v1460
    %v1462 = vrot.slane %v1332, %v1461
    %v1463 = vlaneseq
    %v1464 = vshrl.u32 %v1463, 7
    %v1465 = vsub.s32 0, %v1464
    %v1466 = vrot.slane %v1315, %v1465
    %v1467 = vlaneseq
    %v1468 = vshrl.u32 %v1467, 7
    %v1469 = vsub.s32 0, %v1468
    %v1470 = vrot.slane %v1329, %v1469
    %v1471 = vlaneseq
    %v1472 = vshrl.u32 %v1471, 7
    %v1473 = vsub.s32 0, %v1472
    %v1474 = vrot.slane %v1331, %v1473
    %v1475 = vlaneseq
    %v1476 = vshrl.u32 %v1475, 7
    %v1477 = vsub.s32 0, %v1476
    %v1478 = vrot.slane %v1333, %v1477
    %v1479 = vlaneseq
    %v1480 = vshrl.u32 %v1479, 7
    %v1481 = vsub.s32 0, %v1480
    %v1482 = vrot.slane %v1357, %v1481
    %v1483 = vlaneseq
    %v1484 = vshrl.u32 %v1483, 7
    %v1485 = vsub.s32 0, %v1484
    %v1486 = vrot.slane %v1371, %v1485
    %v1487 = vlaneseq
    %v1488 = vshrl.u32 %v1487, 7
    %v1489 = vsub.s32 0, %v1488
    %v1490 = vrot.slane %v1379, %v1489
    %v1491 = vlaneseq
    %v1492 = vshrl.u32 %v1491, 7
    %v1493 = vsub.s32 0, %v1492
    %v1494 = vrot.slane %v1381, %v1493
    %v1495 = vlaneseq
    %v1496 = vshrl.u32 %v1495, 7
    %v1497 = vsub.s32 0, %v1496
    %v1498 = vrot.slane %v1364, %v1497
    %v1499 = vlaneseq
    %v1500 = vshrl.u32 %v1499, 7
    %v1501 = vsub.s32 0, %v1500
    %v1502 = vrot.slane %v1378, %v1501
    %v1503 = vlaneseq
    %v1504 = vshrl.u32 %v1503, 7
    %v1505 = vsub.s32 0, %v1504
    %v1506 = vrot.slane %v1380, %v1505
    %v1507 = vlaneseq
    %v1508 = vshrl.u32 %v1507, 7
    %v1509 = vsub.s32 0, %v1508
    %v1510 = vrot.slane %v1382, %v1509
    %v1543 = vadd.f32 %v1386, %v1182
    %v1544 = vadd.f32 %v1390, %v1182
    %v1545 = vadd.f32 %v1394, %v1182
    %v1546 = vadd.f32 %v1398, %v1182
    %v1547 = vadd.f32 %v1402, %v1182
    %v1548 = vadd.f32 %v1406, %v1182
    %v1549 = vadd.f32 %v1410, %v1182
    %v1550 = vadd.f32 %v1414, %v1182
    %v1551 = vadd.f32 %v1418, %v1182
    %v1552 = vadd.f32 %v1422, %v1182
    %v1553 = vadd.f32 %v1426, %v1182
    %v1554 = vadd.f32 %v1430, %v1182
    %v1555 = vadd.f32 %v1434, %v1182
    %v1556 = vadd.f32 %v1438, %v1182
    %v1557 = vadd.f32 %v1442, %v1182
    %v1558 = vadd.f32 %v1446, %v1182
    %v1559 = vadd.f32 %v1450, %v1182
    %v1560 = vadd.f32 %v1454, %v1182
    %v1561 = vadd.f32 %v1458, %v1182
    %v1562 = vadd.f32 %v1462, %v1182
    %v1563 = vadd.f32 %v1466, %v1182
    %v1564 = vadd.f32 %v1470, %v1182
    %v1565 = vadd.f32 %v1474, %v1182
    %v1566 = vadd.f32 %v1478, %v1182
    %v1567 = vadd.f32 %v1482, %v1182
    %v1568 = vadd.f32 %v1486, %v1182
    %v1569 = vadd.f32 %v1490, %v1182
    %v1570 = vadd.f32 %v1494, %v1182
    %v1571 = vadd.f32 %v1498, %v1182
    %v1572 = vadd.f32 %v1502, %v1182
    %v1573 = vadd.f32 %v1506, %v1182
    %v1574 = vadd.f32 %v1510, %v1182
    %v1575 = vsel %vm1084, %v1543, -inf
    %1576 = vmax.xlane.f32.xlu0 %v1575
    %v1577 = vpop.xlane.xlu0 %1576
    %v1578 = vsel %vm1084, %v1544, -inf
    %1579 = vmax.xlane.f32.xlu0 %v1578
    %v1580 = vpop.xlane.xlu0 %1579
    %v1581 = vsel %vm1084, %v1545, -inf
    %1582 = vmax.xlane.f32.xlu0 %v1581
    %v1583 = vpop.xlane.xlu0 %1582
    %v1584 = vsel %vm1084, %v1546, -inf
    %1585 = vmax.xlane.f32.xlu0 %v1584
    %v1586 = vpop.xlane.xlu0 %1585
    %v1587 = vsel %vm1084, %v1547, -inf
    %1588 = vmax.xlane.f32.xlu0 %v1587
    %v1589 = vpop.xlane.xlu0 %1588
    %v1590 = vsel %vm1084, %v1548, -inf
    %1591 = vmax.xlane.f32.xlu0 %v1590
    %v1592 = vpop.xlane.xlu0 %1591
    %v1593 = vsel %vm1084, %v1549, -inf
    %1594 = vmax.xlane.f32.xlu0 %v1593
    %v1595 = vpop.xlane.xlu0 %1594
    %v1596 = vsel %vm1084, %v1550, -inf
    %1597 = vmax.xlane.f32.xlu0 %v1596
    %v1598 = vpop.xlane.xlu0 %1597
    %v1599 = vsel %vm1084, %v1551, -inf
    %1600 = vmax.xlane.f32.xlu0 %v1599
    %v1601 = vpop.xlane.xlu0 %1600
    %v1602 = vsel %vm1084, %v1552, -inf
    %1603 = vmax.xlane.f32.xlu0 %v1602
    %v1604 = vpop.xlane.xlu0 %1603
    %v1605 = vsel %vm1084, %v1553, -inf
    %1606 = vmax.xlane.f32.xlu0 %v1605
    %v1607 = vpop.xlane.xlu0 %1606
    %v1608 = vsel %vm1084, %v1554, -inf
    %1609 = vmax.xlane.f32.xlu0 %v1608
    %v1610 = vpop.xlane.xlu0 %1609
    %v1611 = vsel %vm1084, %v1555, -inf
    %1612 = vmax.xlane.f32.xlu0 %v1611
    %v1613 = vpop.xlane.xlu0 %1612
    %v1614 = vsel %vm1084, %v1556, -inf
    %1615 = vmax.xlane.f32.xlu0 %v1614
    %v1616 = vpop.xlane.xlu0 %1615
    %v1617 = vsel %vm1084, %v1557, -inf
    %1618 = vmax.xlane.f32.xlu0 %v1617
    %v1619 = vpop.xlane.xlu0 %1618
    %v1620 = vsel %vm1084, %v1558, -inf
    %1621 = vmax.xlane.f32.xlu0 %v1620
    %v1622 = vpop.xlane.xlu0 %1621
    %v1623 = vsel %vm1084, %v1559, -inf
    %1624 = vmax.xlane.f32.xlu0 %v1623
    %v1625 = vpop.xlane.xlu0 %1624
    %v1626 = vsel %vm1084, %v1560, -inf
    %1627 = vmax.xlane.f32.xlu0 %v1626
    %v1628 = vpop.xlane.xlu0 %1627
    %v1629 = vsel %vm1084, %v1561, -inf
    %1630 = vmax.xlane.f32.xlu0 %v1629
    %v1631 = vpop.xlane.xlu0 %1630
    %v1632 = vsel %vm1084, %v1562, -inf
    %1633 = vmax.xlane.f32.xlu0 %v1632
    %v1634 = vpop.xlane.xlu0 %1633
    %v1635 = vsel %vm1084, %v1563, -inf
    %1636 = vmax.xlane.f32.xlu0 %v1635
    %v1637 = vpop.xlane.xlu0 %1636
    %v1638 = vsel %vm1084, %v1564, -inf
    %1639 = vmax.xlane.f32.xlu0 %v1638
    %v1640 = vpop.xlane.xlu0 %1639
    %v1641 = vsel %vm1084, %v1565, -inf
    %1642 = vmax.xlane.f32.xlu0 %v1641
    %v1643 = vpop.xlane.xlu0 %1642
    %v1644 = vsel %vm1084, %v1566, -inf
    %1645 = vmax.xlane.f32.xlu0 %v1644
    %v1646 = vpop.xlane.xlu0 %1645
    %v1647 = vsel %vm1084, %v1567, -inf
    %1648 = vmax.xlane.f32.xlu0 %v1647
    %v1649 = vpop.xlane.xlu0 %1648
    %v1650 = vsel %vm1084, %v1568, -inf
    %1651 = vmax.xlane.f32.xlu0 %v1650
    %v1652 = vpop.xlane.xlu0 %1651
    %v1653 = vsel %vm1084, %v1569, -inf
    %1654 = vmax.xlane.f32.xlu0 %v1653
    %v1655 = vpop.xlane.xlu0 %1654
    %v1656 = vsel %vm1084, %v1570, -inf
    %1657 = vmax.xlane.f32.xlu0 %v1656
    %v1658 = vpop.xlane.xlu0 %1657
    %v1659 = vsel %vm1084, %v1571, -inf
    %1660 = vmax.xlane.f32.xlu0 %v1659
    %v1661 = vpop.xlane.xlu0 %1660
    %v1662 = vsel %vm1084, %v1572, -inf
    %1663 = vmax.xlane.f32.xlu0 %v1662
    %v1664 = vpop.xlane.xlu0 %1663
    %v1665 = vsel %vm1084, %v1573, -inf
    %1666 = vmax.xlane.f32.xlu0 %v1665
    %v1667 = vpop.xlane.xlu0 %1666
    %v1668 = vsel %vm1084, %v1574, -inf
    %1669 = vmax.xlane.f32.xlu0 %v1668
    %v1670 = vpop.xlane.xlu0 %1669
    %v1671 = vld [vmem:[#allocation4 + $0x38] sm:$0xff]
    %v1672 = vld [vmem:[#allocation4 + $0x40] sm:$0xff]
    %v1673 = vld [vmem:[#allocation4 + $0x48] sm:$0xff]
    %v1674 = vld [vmem:[#allocation4 + $0x50] sm:$0xff]
    %1676 = vset.pattern.permute.xlu0 32
    %1677 = vperm.xlu0 %1676, %v1671
    %v1678 = vpop.permute.xlu0 %1677
    %1681 = vset.pattern.permute.xlu0 32
    %1682 = vperm.xlu0 %1681, %v1672
    %v1683 = vpop.permute.xlu0 %1682
    %1686 = vset.pattern.permute.xlu0 32
    %1687 = vperm.xlu0 %1686, %v1673
    %v1688 = vpop.permute.xlu0 %1687
    %1691 = vset.pattern.permute.xlu0 32
    %1692 = vperm.xlu0 %1691, %v1674
    %v1693 = vpop.permute.xlu0 %1692
    %v1727 = vlaneseq
    %v1728 = vshrl.u32 %v1727, 7
    %v1729 = vsub.s32 %v301, %v1728
    %v1730 = vrot.slane %v1577, %v1729
    %v1731 = vlaneseq
    %v1732 = vshrl.u32 %v1731, 7
    %v1733 = vsub.s32 %v301, %v1732
    %v1734 = vrot.slane %v1580, %v1733
    %v1735 = vlaneseq
    %v1736 = vshrl.u32 %v1735, 7
    %v1737 = vsub.s32 %v301, %v1736
    %v1738 = vrot.slane %v1583, %v1737
    %v1739 = vlaneseq
    %v1740 = vshrl.u32 %v1739, 7
    %v1741 = vsub.s32 %v301, %v1740
    %v1742 = vrot.slane %v1586, %v1741
    %v1743 = vlaneseq
    %v1744 = vshrl.u32 %v1743, 7
    %v1745 = vsub.s32 %v301, %v1744
    %v1746 = vrot.slane %v1589, %v1745
    %v1747 = vlaneseq
    %v1748 = vshrl.u32 %v1747, 7
    %v1749 = vsub.s32 %v301, %v1748
    %v1750 = vrot.slane %v1592, %v1749
    %v1751 = vlaneseq
    %v1752 = vshrl.u32 %v1751, 7
    %v1753 = vsub.s32 %v301, %v1752
    %v1754 = vrot.slane %v1595, %v1753
    %v1755 = vlaneseq
    %v1756 = vshrl.u32 %v1755, 7
    %v1757 = vsub.s32 %v301, %v1756
    %v1758 = vrot.slane %v1598, %v1757
    %v1759 = vlaneseq
    %v1760 = vshrl.u32 %v1759, 7
    %v1761 = vsub.s32 %v301, %v1760
    %v1762 = vrot.slane %v1601, %v1761
    %v1763 = vlaneseq
    %v1764 = vshrl.u32 %v1763, 7
    %v1765 = vsub.s32 %v301, %v1764
    %v1766 = vrot.slane %v1604, %v1765
    %v1767 = vlaneseq
    %v1768 = vshrl.u32 %v1767, 7
    %v1769 = vsub.s32 %v301, %v1768
    %v1770 = vrot.slane %v1607, %v1769
    %v1771 = vlaneseq
    %v1772 = vshrl.u32 %v1771, 7
    %v1773 = vsub.s32 %v301, %v1772
    %v1774 = vrot.slane %v1610, %v1773
    %v1775 = vlaneseq
    %v1776 = vshrl.u32 %v1775, 7
    %v1777 = vsub.s32 %v301, %v1776
    %v1778 = vrot.slane %v1613, %v1777
    %v1779 = vlaneseq
    %v1780 = vshrl.u32 %v1779, 7
    %v1781 = vsub.s32 %v301, %v1780
    %v1782 = vrot.slane %v1616, %v1781
    %v1783 = vlaneseq
    %v1784 = vshrl.u32 %v1783, 7
    %v1785 = vsub.s32 %v301, %v1784
    %v1786 = vrot.slane %v1619, %v1785
    %v1787 = vlaneseq
    %v1788 = vshrl.u32 %v1787, 7
    %v1789 = vsub.s32 %v301, %v1788
    %v1790 = vrot.slane %v1622, %v1789
    %v1791 = vlaneseq
    %v1792 = vshrl.u32 %v1791, 7
    %v1793 = vsub.s32 %v301, %v1792
    %v1794 = vrot.slane %v1625, %v1793
    %v1795 = vlaneseq
    %v1796 = vshrl.u32 %v1795, 7
    %v1797 = vsub.s32 %v301, %v1796
    %v1798 = vrot.slane %v1628, %v1797
    %v1799 = vlaneseq
    %v1800 = vshrl.u32 %v1799, 7
    %v1801 = vsub.s32 %v301, %v1800
    %v1802 = vrot.slane %v1631, %v1801
    %v1803 = vlaneseq
    %v1804 = vshrl.u32 %v1803, 7
    %v1805 = vsub.s32 %v301, %v1804
    %v1806 = vrot.slane %v1634, %v1805
    %v1807 = vlaneseq
    %v1808 = vshrl.u32 %v1807, 7
    %v1809 = vsub.s32 %v301, %v1808
    %v1810 = vrot.slane %v1637, %v1809
    %v1811 = vlaneseq
    %v1812 = vshrl.u32 %v1811, 7
    %v1813 = vsub.s32 %v301, %v1812
    %v1814 = vrot.slane %v1640, %v1813
    %v1815 = vlaneseq
    %v1816 = vshrl.u32 %v1815, 7
    %v1817 = vsub.s32 %v301, %v1816
    %v1818 = vrot.slane %v1643, %v1817
    %v1819 = vlaneseq
    %v1820 = vshrl.u32 %v1819, 7
    %v1821 = vsub.s32 %v301, %v1820
    %v1822 = vrot.slane %v1646, %v1821
    %v1823 = vlaneseq
    %v1824 = vshrl.u32 %v1823, 7
    %v1825 = vsub.s32 %v301, %v1824
    %v1826 = vrot.slane %v1649, %v1825
    %v1827 = vlaneseq
    %v1828 = vshrl.u32 %v1827, 7
    %v1829 = vsub.s32 %v301, %v1828
    %v1830 = vrot.slane %v1652, %v1829
    %v1831 = vlaneseq
    %v1832 = vshrl.u32 %v1831, 7
    %v1833 = vsub.s32 %v301, %v1832
    %v1834 = vrot.slane %v1655, %v1833
    %v1835 = vlaneseq
    %v1836 = vshrl.u32 %v1835, 7
    %v1837 = vsub.s32 %v301, %v1836
    %v1838 = vrot.slane %v1658, %v1837
    %v1839 = vlaneseq
    %v1840 = vshrl.u32 %v1839, 7
    %v1841 = vsub.s32 %v301, %v1840
    %v1842 = vrot.slane %v1661, %v1841
    %v1843 = vlaneseq
    %v1844 = vshrl.u32 %v1843, 7
    %v1845 = vsub.s32 %v301, %v1844
    %v1846 = vrot.slane %v1664, %v1845
    %v1847 = vlaneseq
    %v1848 = vshrl.u32 %v1847, 7
    %v1849 = vsub.s32 %v301, %v1848
    %v1850 = vrot.slane %v1667, %v1849
    %v1851 = vlaneseq
    %v1852 = vshrl.u32 %v1851, 7
    %v1853 = vsub.s32 %v301, %v1852
    %v1854 = vrot.slane %v1670, %v1853
    %v1855 = vsel %vm460, %v1734, %v1730
    %v1856 = vsel %vm462, %v1738, %v1855
    %v1857 = vsel %vm464, %v1742, %v1856
    %v1858 = vsel %vm466, %v1746, %v1857
    %v1859 = vsel %vm468, %v1750, %v1858
    %v1860 = vsel %vm470, %v1754, %v1859
    %v1861 = vsel %vm472, %v1758, %v1860
    %v1862 = vsel %vm460, %v1766, %v1762
    %v1863 = vsel %vm462, %v1770, %v1862
    %v1864 = vsel %vm464, %v1774, %v1863
    %v1865 = vsel %vm466, %v1778, %v1864
    %v1866 = vsel %vm468, %v1782, %v1865
    %v1867 = vsel %vm470, %v1786, %v1866
    %v1868 = vsel %vm472, %v1790, %v1867
    %v1869 = vsel %vm460, %v1798, %v1794
    %v1870 = vsel %vm462, %v1802, %v1869
    %v1871 = vsel %vm464, %v1806, %v1870
    %v1872 = vsel %vm466, %v1810, %v1871
    %v1873 = vsel %vm468, %v1814, %v1872
    %v1874 = vsel %vm470, %v1818, %v1873
    %v1875 = vsel %vm472, %v1822, %v1874
    %v1876 = vsel %vm460, %v1830, %v1826
    %v1877 = vsel %vm462, %v1834, %v1876
    %v1878 = vsel %vm464, %v1838, %v1877
    %v1879 = vsel %vm466, %v1842, %v1878
    %v1880 = vsel %vm468, %v1846, %v1879
    %v1881 = vsel %vm470, %v1850, %v1880
    %v1882 = vsel %vm472, %v1854, %v1881
    %vm1887 = vcmask 261120
    %v1888 = vsel %vm1887, %v1671, 0
    %v1890 = vsel %vm1887, %v1672, 0
    %v1892 = vsel %vm1887, %v1673, 0
    %v1894 = vsel %vm1887, %v1674, 0
    %1896 = vmatprep.subr.mxu0 0.0
    %1897 = vmatpush1.msra.mxu0 0.0
    %1898 = vmatprep.subr.mxu0 0.0
    %1899 = vmatpush1.msra.mxu0 0.0
    %1900 = vmatprep.subr.mxu0 0.0
    %1901 = vmatpush1.msra.mxu0 0.0
    %1902 = vmatprep.subr.mxu0 0.0
    %1903 = vmatpush1.msra.mxu0 0.0
    %1904 = vmatprep.subr.mxu0 0.0
    %1905 = vmatpush1.msra.mxu0 0.0
    %1906 = vmatprep.subr.mxu0 0.0
    %1907 = vmatpush1.msra.mxu0 0.0
    %1908 = vmatprep.subr.mxu0 0.0
    %1909 = vmatpush1.msra.mxu0 0.0
    %1910 = vmatprep.subr.mxu0 0.0
    %1911 = vmatpush1.msra.mxu0 0.0
    %1912 = vmatprep.subr.mxu0 0.0
    %1913 = vmatpush1.msra.mxu0 0.0
    %1914 = vmatprep.subr.mxu0 0.0
    %1915 = vmatpush1.msra.mxu0 0.0
    %1916 = vmatprep.subr.mxu0 0.0
    %1917 = vmatpush1.msra.mxu0 0.0
    %1918 = vmatprep.subr.mxu0 0.0
    %1919 = vmatpush1.msra.mxu0 0.0
    %1920 = vmatprep.subr.mxu0 0.0
    %1921 = vmatpush1.msra.mxu0 %v1882
    %1922 = vmatprep.subr.mxu0 0.0
    %1923 = vmatpush1.msra.mxu0 %v1875
    %1924 = vmatprep.subr.mxu0 0.0
    %1925 = vmatpush1.msra.mxu0 %v1868
    %1926 = vmatprep.subr.mxu0 0.0
    %1927 = vmatpush1.msra.mxu0 %v1861
    %1928 = vmatprep.subr.mxu0 0.0
    %1929 = vmatpush2.msra.mxu0 0.0
    %1930 = vmatprep.subr.mxu0 0.0
    %1931 = vmatpush2.msra.mxu0 0.0
    %1932 = vmatprep.subr.mxu0 0.0
    %1933 = vmatpush2.msra.mxu0 0.0
    %1934 = vmatprep.subr.mxu0 0.0
    %1935 = vmatpush2.msra.mxu0 0.0
    %1936 = vmatprep.subr.mxu0 0.0
    %1937 = vmatpush2.msra.mxu0 0.0
    %1938 = vmatprep.subr.mxu0 0.0
    %1939 = vmatpush2.msra.mxu0 0.0
    %1940 = vmatprep.subr.mxu0 0.0
    %1941 = vmatpush2.msra.mxu0 0.0
    %1942 = vmatprep.subr.mxu0 0.0
    %1943 = vmatpush2.msra.mxu0 0.0
    %1944 = vmatprep.subr.mxu0 0.0
    %1945 = vmatpush2.msra.mxu0 0.0
    %1946 = vmatprep.subr.mxu0 0.0
    %1947 = vmatpush2.msra.mxu0 0.0
    %1948 = vmatprep.subr.mxu0 0.0
    %1949 = vmatpush2.msra.mxu0 0.0
    %1950 = vmatprep.subr.mxu0 0.0
    %1951 = vmatpush2.msra.mxu0 0.0
    %1952 = vmatprep.subr.mxu0 0.0
    %1953 = vmatpush2.msra.mxu0 0.0
    %1954 = vmatprep.subr.mxu0 0.0
    %1955 = vmatpush2.msra.mxu0 0.0
    %1956 = vmatprep.subr.mxu0 0.0
    %1957 = vmatpush2.msra.mxu0 0.0
    %1958 = vmatprep.subr.mxu0 0.0
    %1959 = vmatpush2.msra.mxu0 0.0
    %1960 = vmatprep.mubr.f32.mxu0 0.0
    %1961 = vmatmul.mubr.f32.gmra.mxu0 %v1888
    %v1962 = vpop.f32.mrf.mxu0
    %v1963 = vadd.f32 %v1678, %v1962
    %v1964 = vpop.f32.mrf.mxu0
    %1965 = vmatprep.mubr.f32.mxu0 0.0
    %1966 = vmatmul.mubr.f32.gmra.mxu0 %v1890
    %v1967 = vpop.f32.mrf.mxu0
    %v1968 = vadd.f32 %v1683, %v1967
    %v1969 = vpop.f32.mrf.mxu0
    %1970 = vmatprep.mubr.f32.mxu0 0.0
    %1971 = vmatmul.mubr.f32.gmra.mxu0 %v1892
    %v1972 = vpop.f32.mrf.mxu0
    %v1973 = vadd.f32 %v1688, %v1972
    %v1974 = vpop.f32.mrf.mxu0
    %1975 = vmatprep.mubr.f32.mxu0 0.0
    %1976 = vmatmul.mubr.f32.gmra.mxu0 %v1894
    %v1977 = vpop.f32.mrf.mxu0
    %v1978 = vadd.f32 %v1693, %v1977
    %v1979 = vpop.f32.mrf.mxu0
    %1980 = vdwg.mxu0
    %v1981 = vmax.f32 %v1963, 0.0
    %v1982 = vmax.f32 %v1968, 0.0
    %v1983 = vmax.f32 %v1973, 0.0
    %v1984 = vmax.f32 %v1978, 0.0
    %1985 = vset.pattern.permute.xlu0 33
    %1986 = vperm.xlu0 %1985, %v1671
    %v1987 = vpop.permute.xlu0 %1986
    %1989 = vset.pattern.permute.xlu0 33
    %1990 = vperm.xlu0 %1989, %v1672
    %v1991 = vpop.permute.xlu0 %1990
    %1993 = vset.pattern.permute.xlu0 33
    %1994 = vperm.xlu0 %1993, %v1673
    %v1995 = vpop.permute.xlu0 %1994
    %1997 = vset.pattern.permute.xlu0 33
    %1998 = vperm.xlu0 %1997, %v1674
    %v1999 = vpop.permute.xlu0 %1998
    %v2001 = vmul.f32 %v1981, %v1987
    %v2002 = vmul.f32 %v1982, %v1991
    %v2003 = vmul.f32 %v1983, %v1995
    %v2004 = vmul.f32 %v1984, %v1999
    %2005 = vset.pattern.permute.xlu0 34
    %2006 = vperm.xlu0 %2005, %v1671
    %v2007 = vpop.permute.xlu0 %2006
    %2009 = vset.pattern.permute.xlu0 34
    %2010 = vperm.xlu0 %2009, %v1672
    %v2011 = vpop.permute.xlu0 %2010
    %2013 = vset.pattern.permute.xlu0 34
    %2014 = vperm.xlu0 %2013, %v1673
    %v2015 = vpop.permute.xlu0 %2014
    %2017 = vset.pattern.permute.xlu0 34
    %2018 = vperm.xlu0 %2017, %v1674
    %v2019 = vpop.permute.xlu0 %2018
    %v2021 = vadd.f32 %v2001, %v2007
    %v2022 = vadd.f32 %v2002, %v2011
    %v2023 = vadd.f32 %v2003, %v2015
    %v2024 = vadd.f32 %v2004, %v2019
    %v2025 = vld [vmem:[#allocation4 + $0x90] sm:$0xf]
    %v2030 = vcombine.high %v2021, %v2021
    %v2032 = vunpack.c.l.s4 1966171168
    %v2033 = vunpack.c.0.s8 %v2032
    %v2034 = vlaneseq
    %v2035 = vshrl.u32 %v2034, 7
    %v2036 = vsub.s32 %v2033, %v2035
    %v2037 = vrot.slane %v2021, %v2036
    %v2039 = vunpack.c.l.s4 1966171168
    %v2040 = vunpack.c.0.s8 %v2039
    %v2041 = vlaneseq
    %v2042 = vshrl.u32 %v2041, 7
    %v2043 = vsub.s32 %v2040, %v2042
    %v2044 = vrot.slane %v2030, %v2043
    %v2045 = vcombine.high %v2037, %v2037
    %v2046 = vcombine.high %v2044, %v2044
    %v2048 = vunpack.c.l.s4 1966171168
    %v2049 = vunpack.c.0.s8 %v2048
    %v2050 = vlaneseq
    %v2051 = vshrl.u32 %v2050, 7
    %v2052 = vsub.s32 %v2049, %v2051
    %v2053 = vrot.slane %v2037, %v2052
    %v2055 = vunpack.c.l.s4 1966171168
    %v2056 = vunpack.c.0.s8 %v2055
    %v2057 = vlaneseq
    %v2058 = vshrl.u32 %v2057, 7
    %v2059 = vsub.s32 %v2056, %v2058
    %v2060 = vrot.slane %v2044, %v2059
    %v2062 = vunpack.c.l.s4 1966171168
    %v2063 = vunpack.c.0.s8 %v2062
    %v2064 = vlaneseq
    %v2065 = vshrl.u32 %v2064, 7
    %v2066 = vsub.s32 %v2063, %v2065
    %v2067 = vrot.slane %v2045, %v2066
    %v2069 = vunpack.c.l.s4 1966171168
    %v2070 = vunpack.c.0.s8 %v2069
    %v2071 = vlaneseq
    %v2072 = vshrl.u32 %v2071, 7
    %v2073 = vsub.s32 %v2070, %v2072
    %v2074 = vrot.slane %v2046, %v2073
    %v2075 = vcombine.high %v2053, %v2053
    %v2076 = vcombine.high %v2060, %v2060
    %v2077 = vcombine.high %v2067, %v2067
    %v2078 = vcombine.high %v2074, %v2074
    %v2079 = vcombine.high %v2022, %v2022
    %v2081 = vunpack.c.l.s4 1966171168
    %v2082 = vunpack.c.0.s8 %v2081
    %v2083 = vlaneseq
    %v2084 = vshrl.u32 %v2083, 7
    %v2085 = vsub.s32 %v2082, %v2084
    %v2086 = vrot.slane %v2022, %v2085
    %v2088 = vunpack.c.l.s4 1966171168
    %v2089 = vunpack.c.0.s8 %v2088
    %v2090 = vlaneseq
    %v2091 = vshrl.u32 %v2090, 7
    %v2092 = vsub.s32 %v2089, %v2091
    %v2093 = vrot.slane %v2079, %v2092
    %v2094 = vcombine.high %v2086, %v2086
    %v2095 = vcombine.high %v2093, %v2093
    %v2097 = vunpack.c.l.s4 1966171168
    %v2098 = vunpack.c.0.s8 %v2097
    %v2099 = vlaneseq
    %v2100 = vshrl.u32 %v2099, 7
    %v2101 = vsub.s32 %v2098, %v2100
    %v2102 = vrot.slane %v2086, %v2101
    %v2104 = vunpack.c.l.s4 1966171168
    %v2105 = vunpack.c.0.s8 %v2104
    %v2106 = vlaneseq
    %v2107 = vshrl.u32 %v2106, 7
    %v2108 = vsub.s32 %v2105, %v2107
    %v2109 = vrot.slane %v2093, %v2108
    %v2111 = vunpack.c.l.s4 1966171168
    %v2112 = vunpack.c.0.s8 %v2111
    %v2113 = vlaneseq
    %v2114 = vshrl.u32 %v2113, 7
    %v2115 = vsub.s32 %v2112, %v2114
    %v2116 = vrot.slane %v2094, %v2115
    %v2118 = vunpack.c.l.s4 1966171168
    %v2119 = vunpack.c.0.s8 %v2118
    %v2120 = vlaneseq
    %v2121 = vshrl.u32 %v2120, 7
    %v2122 = vsub.s32 %v2119, %v2121
    %v2123 = vrot.slane %v2095, %v2122
    %v2124 = vcombine.high %v2102, %v2102
    %v2125 = vcombine.high %v2109, %v2109
    %v2126 = vcombine.high %v2116, %v2116
    %v2127 = vcombine.high %v2123, %v2123
    %v2128 = vcombine.high %v2023, %v2023
    %v2130 = vunpack.c.l.s4 1966171168
    %v2131 = vunpack.c.0.s8 %v2130
    %v2132 = vlaneseq
    %v2133 = vshrl.u32 %v2132, 7
    %v2134 = vsub.s32 %v2131, %v2133
    %v2135 = vrot.slane %v2023, %v2134
    %v2137 = vunpack.c.l.s4 1966171168
    %v2138 = vunpack.c.0.s8 %v2137
    %v2139 = vlaneseq
    %v2140 = vshrl.u32 %v2139, 7
    %v2141 = vsub.s32 %v2138, %v2140
    %v2142 = vrot.slane %v2128, %v2141
    %v2143 = vcombine.high %v2135, %v2135
    %v2144 = vcombine.high %v2142, %v2142
    %v2146 = vunpack.c.l.s4 1966171168
    %v2147 = vunpack.c.0.s8 %v2146
    %v2148 = vlaneseq
    %v2149 = vshrl.u32 %v2148, 7
    %v2150 = vsub.s32 %v2147, %v2149
    %v2151 = vrot.slane %v2135, %v2150
    %v2153 = vunpack.c.l.s4 1966171168
    %v2154 = vunpack.c.0.s8 %v2153
    %v2155 = vlaneseq
    %v2156 = vshrl.u32 %v2155, 7
    %v2157 = vsub.s32 %v2154, %v2156
    %v2158 = vrot.slane %v2142, %v2157
    %v2160 = vunpack.c.l.s4 1966171168
    %v2161 = vunpack.c.0.s8 %v2160
    %v2162 = vlaneseq
    %v2163 = vshrl.u32 %v2162, 7
    %v2164 = vsub.s32 %v2161, %v2163
    %v2165 = vrot.slane %v2143, %v2164
    %v2167 = vunpack.c.l.s4 1966171168
    %v2168 = vunpack.c.0.s8 %v2167
    %v2169 = vlaneseq
    %v2170 = vshrl.u32 %v2169, 7
    %v2171 = vsub.s32 %v2168, %v2170
    %v2172 = vrot.slane %v2144, %v2171
    %v2173 = vcombine.high %v2151, %v2151
    %v2174 = vcombine.high %v2158, %v2158
    %v2175 = vcombine.high %v2165, %v2165
    %v2176 = vcombine.high %v2172, %v2172
    %v2177 = vcombine.high %v2024, %v2024
    %v2179 = vunpack.c.l.s4 1966171168
    %v2180 = vunpack.c.0.s8 %v2179
    %v2181 = vlaneseq
    %v2182 = vshrl.u32 %v2181, 7
    %v2183 = vsub.s32 %v2180, %v2182
    %v2184 = vrot.slane %v2024, %v2183
    %v2186 = vunpack.c.l.s4 1966171168
    %v2187 = vunpack.c.0.s8 %v2186
    %v2188 = vlaneseq
    %v2189 = vshrl.u32 %v2188, 7
    %v2190 = vsub.s32 %v2187, %v2189
    %v2191 = vrot.slane %v2177, %v2190
    %v2192 = vcombine.high %v2184, %v2184
    %v2193 = vcombine.high %v2191, %v2191
    %v2195 = vunpack.c.l.s4 1966171168
    %v2196 = vunpack.c.0.s8 %v2195
    %v2197 = vlaneseq
    %v2198 = vshrl.u32 %v2197, 7
    %v2199 = vsub.s32 %v2196, %v2198
    %v2200 = vrot.slane %v2184, %v2199
    %v2202 = vunpack.c.l.s4 1966171168
    %v2203 = vunpack.c.0.s8 %v2202
    %v2204 = vlaneseq
    %v2205 = vshrl.u32 %v2204, 7
    %v2206 = vsub.s32 %v2203, %v2205
    %v2207 = vrot.slane %v2191, %v2206
    %v2209 = vunpack.c.l.s4 1966171168
    %v2210 = vunpack.c.0.s8 %v2209
    %v2211 = vlaneseq
    %v2212 = vshrl.u32 %v2211, 7
    %v2213 = vsub.s32 %v2210, %v2212
    %v2214 = vrot.slane %v2192, %v2213
    %v2216 = vunpack.c.l.s4 1966171168
    %v2217 = vunpack.c.0.s8 %v2216
    %v2218 = vlaneseq
    %v2219 = vshrl.u32 %v2218, 7
    %v2220 = vsub.s32 %v2217, %v2219
    %v2221 = vrot.slane %v2193, %v2220
    %v2222 = vcombine.high %v2200, %v2200
    %v2223 = vcombine.high %v2207, %v2207
    %v2224 = vcombine.high %v2214, %v2214
    %v2225 = vcombine.high %v2221, %v2221
    %v2226 = vlaneseq
    %v2227 = vshrl.u32 %v2226, 7
    %v2228 = vsub.s32 0, %v2227
    %v2229 = vrot.slane %v2053, %v2228
    %v2230 = vlaneseq
    %v2231 = vshrl.u32 %v2230, 7
    %v2232 = vsub.s32 0, %v2231
    %v2233 = vrot.slane %v2067, %v2232
    %v2234 = vlaneseq
    %v2235 = vshrl.u32 %v2234, 7
    %v2236 = vsub.s32 0, %v2235
    %v2237 = vrot.slane %v2075, %v2236
    %v2238 = vlaneseq
    %v2239 = vshrl.u32 %v2238, 7
    %v2240 = vsub.s32 0, %v2239
    %v2241 = vrot.slane %v2077, %v2240
    %v2242 = vlaneseq
    %v2243 = vshrl.u32 %v2242, 7
    %v2244 = vsub.s32 0, %v2243
    %v2245 = vrot.slane %v2060, %v2244
    %v2246 = vlaneseq
    %v2247 = vshrl.u32 %v2246, 7
    %v2248 = vsub.s32 0, %v2247
    %v2249 = vrot.slane %v2074, %v2248
    %v2250 = vlaneseq
    %v2251 = vshrl.u32 %v2250, 7
    %v2252 = vsub.s32 0, %v2251
    %v2253 = vrot.slane %v2076, %v2252
    %v2254 = vlaneseq
    %v2255 = vshrl.u32 %v2254, 7
    %v2256 = vsub.s32 0, %v2255
    %v2257 = vrot.slane %v2078, %v2256
    %v2258 = vlaneseq
    %v2259 = vshrl.u32 %v2258, 7
    %v2260 = vsub.s32 0, %v2259
    %v2261 = vrot.slane %v2102, %v2260
    %v2262 = vlaneseq
    %v2263 = vshrl.u32 %v2262, 7
    %v2264 = vsub.s32 0, %v2263
    %v2265 = vrot.slane %v2116, %v2264
    %v2266 = vlaneseq
    %v2267 = vshrl.u32 %v2266, 7
    %v2268 = vsub.s32 0, %v2267
    %v2269 = vrot.slane %v2124, %v2268
    %v2270 = vlaneseq
    %v2271 = vshrl.u32 %v2270, 7
    %v2272 = vsub.s32 0, %v2271
    %v2273 = vrot.slane %v2126, %v2272
    %v2274 = vlaneseq
    %v2275 = vshrl.u32 %v2274, 7
    %v2276 = vsub.s32 0, %v2275
    %v2277 = vrot.slane %v2109, %v2276
    %v2278 = vlaneseq
    %v2279 = vshrl.u32 %v2278, 7
    %v2280 = vsub.s32 0, %v2279
    %v2281 = vrot.slane %v2123, %v2280
    %v2282 = vlaneseq
    %v2283 = vshrl.u32 %v2282, 7
    %v2284 = vsub.s32 0, %v2283
    %v2285 = vrot.slane %v2125, %v2284
    %v2286 = vlaneseq
    %v2287 = vshrl.u32 %v2286, 7
    %v2288 = vsub.s32 0, %v2287
    %v2289 = vrot.slane %v2127, %v2288
    %v2290 = vlaneseq
    %v2291 = vshrl.u32 %v2290, 7
    %v2292 = vsub.s32 0, %v2291
    %v2293 = vrot.slane %v2151, %v2292
    %v2294 = vlaneseq
    %v2295 = vshrl.u32 %v2294, 7
    %v2296 = vsub.s32 0, %v2295
    %v2297 = vrot.slane %v2165, %v2296
    %v2298 = vlaneseq
    %v2299 = vshrl.u32 %v2298, 7
    %v2300 = vsub.s32 0, %v2299
    %v2301 = vrot.slane %v2173, %v2300
    %v2302 = vlaneseq
    %v2303 = vshrl.u32 %v2302, 7
    %v2304 = vsub.s32 0, %v2303
    %v2305 = vrot.slane %v2175, %v2304
    %v2306 = vlaneseq
    %v2307 = vshrl.u32 %v2306, 7
    %v2308 = vsub.s32 0, %v2307
    %v2309 = vrot.slane %v2158, %v2308
    %v2310 = vlaneseq
    %v2311 = vshrl.u32 %v2310, 7
    %v2312 = vsub.s32 0, %v2311
    %v2313 = vrot.slane %v2172, %v2312
    %v2314 = vlaneseq
    %v2315 = vshrl.u32 %v2314, 7
    %v2316 = vsub.s32 0, %v2315
    %v2317 = vrot.slane %v2174, %v2316
    %v2318 = vlaneseq
    %v2319 = vshrl.u32 %v2318, 7
    %v2320 = vsub.s32 0, %v2319
    %v2321 = vrot.slane %v2176, %v2320
    %v2322 = vlaneseq
    %v2323 = vshrl.u32 %v2322, 7
    %v2324 = vsub.s32 0, %v2323
    %v2325 = vrot.slane %v2200, %v2324
    %v2326 = vlaneseq
    %v2327 = vshrl.u32 %v2326, 7
    %v2328 = vsub.s32 0, %v2327
    %v2329 = vrot.slane %v2214, %v2328
    %v2330 = vlaneseq
    %v2331 = vshrl.u32 %v2330, 7
    %v2332 = vsub.s32 0, %v2331
    %v2333 = vrot.slane %v2222, %v2332
    %v2334 = vlaneseq
    %v2335 = vshrl.u32 %v2334, 7
    %v2336 = vsub.s32 0, %v2335
    %v2337 = vrot.slane %v2224, %v2336
    %v2338 = vlaneseq
    %v2339 = vshrl.u32 %v2338, 7
    %v2340 = vsub.s32 0, %v2339
    %v2341 = vrot.slane %v2207, %v2340
    %v2342 = vlaneseq
    %v2343 = vshrl.u32 %v2342, 7
    %v2344 = vsub.s32 0, %v2343
    %v2345 = vrot.slane %v2221, %v2344
    %v2346 = vlaneseq
    %v2347 = vshrl.u32 %v2346, 7
    %v2348 = vsub.s32 0, %v2347
    %v2349 = vrot.slane %v2223, %v2348
    %v2350 = vlaneseq
    %v2351 = vshrl.u32 %v2350, 7
    %v2352 = vsub.s32 0, %v2351
    %v2353 = vrot.slane %v2225, %v2352
    %v2386 = vadd.f32 %v2229, %v2025
    %v2387 = vadd.f32 %v2233, %v2025
    %v2388 = vadd.f32 %v2237, %v2025
    %v2389 = vadd.f32 %v2241, %v2025
    %v2390 = vadd.f32 %v2245, %v2025
    %v2391 = vadd.f32 %v2249, %v2025
    %v2392 = vadd.f32 %v2253, %v2025
    %v2393 = vadd.f32 %v2257, %v2025
    %v2394 = vadd.f32 %v2261, %v2025
    %v2395 = vadd.f32 %v2265, %v2025
    %v2396 = vadd.f32 %v2269, %v2025
    %v2397 = vadd.f32 %v2273, %v2025
    %v2398 = vadd.f32 %v2277, %v2025
    %v2399 = vadd.f32 %v2281, %v2025
    %v2400 = vadd.f32 %v2285, %v2025
    %v2401 = vadd.f32 %v2289, %v2025
    %v2402 = vadd.f32 %v2293, %v2025
    %v2403 = vadd.f32 %v2297, %v2025
    %v2404 = vadd.f32 %v2301, %v2025
    %v2405 = vadd.f32 %v2305, %v2025
    %v2406 = vadd.f32 %v2309, %v2025
    %v2407 = vadd.f32 %v2313, %v2025
    %v2408 = vadd.f32 %v2317, %v2025
    %v2409 = vadd.f32 %v2321, %v2025
    %v2410 = vadd.f32 %v2325, %v2025
    %v2411 = vadd.f32 %v2329, %v2025
    %v2412 = vadd.f32 %v2333, %v2025
    %v2413 = vadd.f32 %v2337, %v2025
    %v2414 = vadd.f32 %v2341, %v2025
    %v2415 = vadd.f32 %v2345, %v2025
    %v2416 = vadd.f32 %v2349, %v2025
    %v2417 = vadd.f32 %v2353, %v2025
    %vm2418 = vcmask 60416
    %v2419 = vsel %vm2418, %v2386, -inf
    %2420 = vmax.xlane.f32.xlu0 %v2419
    %v2421 = vpop.xlane.xlu0 %2420
    %v2422 = vsel %vm2418, %v2387, -inf
    %2423 = vmax.xlane.f32.xlu0 %v2422
    %v2424 = vpop.xlane.xlu0 %2423
    %v2425 = vsel %vm2418, %v2388, -inf
    %2426 = vmax.xlane.f32.xlu0 %v2425
    %v2427 = vpop.xlane.xlu0 %2426
    %v2428 = vsel %vm2418, %v2389, -inf
    %2429 = vmax.xlane.f32.xlu0 %v2428
    %v2430 = vpop.xlane.xlu0 %2429
    %v2431 = vsel %vm2418, %v2390, -inf
    %2432 = vmax.xlane.f32.xlu0 %v2431
    %v2433 = vpop.xlane.xlu0 %2432
    %v2434 = vsel %vm2418, %v2391, -inf
    %2435 = vmax.xlane.f32.xlu0 %v2434
    %v2436 = vpop.xlane.xlu0 %2435
    %v2437 = vsel %vm2418, %v2392, -inf
    %2438 = vmax.xlane.f32.xlu0 %v2437
    %v2439 = vpop.xlane.xlu0 %2438
    %v2440 = vsel %vm2418, %v2393, -inf
    %2441 = vmax.xlane.f32.xlu0 %v2440
    %v2442 = vpop.xlane.xlu0 %2441
    %v2443 = vsel %vm2418, %v2394, -inf
    %2444 = vmax.xlane.f32.xlu0 %v2443
    %v2445 = vpop.xlane.xlu0 %2444
    %v2446 = vsel %vm2418, %v2395, -inf
    %2447 = vmax.xlane.f32.xlu0 %v2446
    %v2448 = vpop.xlane.xlu0 %2447
    %v2449 = vsel %vm2418, %v2396, -inf
    %2450 = vmax.xlane.f32.xlu0 %v2449
    %v2451 = vpop.xlane.xlu0 %2450
    %v2452 = vsel %vm2418, %v2397, -inf
    %2453 = vmax.xlane.f32.xlu0 %v2452
    %v2454 = vpop.xlane.xlu0 %2453
    %v2455 = vsel %vm2418, %v2398, -inf
    %2456 = vmax.xlane.f32.xlu0 %v2455
    %v2457 = vpop.xlane.xlu0 %2456
    %v2458 = vsel %vm2418, %v2399, -inf
    %2459 = vmax.xlane.f32.xlu0 %v2458
    %v2460 = vpop.xlane.xlu0 %2459
    %v2461 = vsel %vm2418, %v2400, -inf
    %2462 = vmax.xlane.f32.xlu0 %v2461
    %v2463 = vpop.xlane.xlu0 %2462
    %v2464 = vsel %vm2418, %v2401, -inf
    %2465 = vmax.xlane.f32.xlu0 %v2464
    %v2466 = vpop.xlane.xlu0 %2465
    %v2467 = vsel %vm2418, %v2402, -inf
    %2468 = vmax.xlane.f32.xlu0 %v2467
    %v2469 = vpop.xlane.xlu0 %2468
    %v2470 = vsel %vm2418, %v2403, -inf
    %2471 = vmax.xlane.f32.xlu0 %v2470
    %v2472 = vpop.xlane.xlu0 %2471
    %v2473 = vsel %vm2418, %v2404, -inf
    %2474 = vmax.xlane.f32.xlu0 %v2473
    %v2475 = vpop.xlane.xlu0 %2474
    %v2476 = vsel %vm2418, %v2405, -inf
    %2477 = vmax.xlane.f32.xlu0 %v2476
    %v2478 = vpop.xlane.xlu0 %2477
    %v2479 = vsel %vm2418, %v2406, -inf
    %2480 = vmax.xlane.f32.xlu0 %v2479
    %v2481 = vpop.xlane.xlu0 %2480
    %v2482 = vsel %vm2418, %v2407, -inf
    %2483 = vmax.xlane.f32.xlu0 %v2482
    %v2484 = vpop.xlane.xlu0 %2483
    %v2485 = vsel %vm2418, %v2408, -inf
    %2486 = vmax.xlane.f32.xlu0 %v2485
    %v2487 = vpop.xlane.xlu0 %2486
    %v2488 = vsel %vm2418, %v2409, -inf
    %2489 = vmax.xlane.f32.xlu0 %v2488
    %v2490 = vpop.xlane.xlu0 %2489
    %v2491 = vsel %vm2418, %v2410, -inf
    %2492 = vmax.xlane.f32.xlu0 %v2491
    %v2493 = vpop.xlane.xlu0 %2492
    %v2494 = vsel %vm2418, %v2411, -inf
    %2495 = vmax.xlane.f32.xlu0 %v2494
    %v2496 = vpop.xlane.xlu0 %2495
    %v2497 = vsel %vm2418, %v2412, -inf
    %2498 = vmax.xlane.f32.xlu0 %v2497
    %v2499 = vpop.xlane.xlu0 %2498
    %v2500 = vsel %vm2418, %v2413, -inf
    %2501 = vmax.xlane.f32.xlu0 %v2500
    %v2502 = vpop.xlane.xlu0 %2501
    %v2503 = vsel %vm2418, %v2414, -inf
    %2504 = vmax.xlane.f32.xlu0 %v2503
    %v2505 = vpop.xlane.xlu0 %2504
    %v2506 = vsel %vm2418, %v2415, -inf
    %2507 = vmax.xlane.f32.xlu0 %v2506
    %v2508 = vpop.xlane.xlu0 %2507
    %v2509 = vsel %vm2418, %v2416, -inf
    %2510 = vmax.xlane.f32.xlu0 %v2509
    %v2511 = vpop.xlane.xlu0 %2510
    %v2512 = vsel %vm2418, %v2417, -inf
    %2513 = vmax.xlane.f32.xlu0 %v2512
    %v2514 = vpop.xlane.xlu0 %2513
    %v2547 = vlaneseq
    %v2548 = vshrl.u32 %v2547, 7
    %v2549 = vsub.s32 %v301, %v2548
    %v2550 = vrot.slane %v2421, %v2549
    %v2551 = vlaneseq
    %v2552 = vshrl.u32 %v2551, 7
    %v2553 = vsub.s32 %v301, %v2552
    %v2554 = vrot.slane %v2424, %v2553
    %v2555 = vlaneseq
    %v2556 = vshrl.u32 %v2555, 7
    %v2557 = vsub.s32 %v301, %v2556
    %v2558 = vrot.slane %v2427, %v2557
    %v2559 = vlaneseq
    %v2560 = vshrl.u32 %v2559, 7
    %v2561 = vsub.s32 %v301, %v2560
    %v2562 = vrot.slane %v2430, %v2561
    %v2563 = vlaneseq
    %v2564 = vshrl.u32 %v2563, 7
    %v2565 = vsub.s32 %v301, %v2564
    %v2566 = vrot.slane %v2433, %v2565
    %v2567 = vlaneseq
    %v2568 = vshrl.u32 %v2567, 7
    %v2569 = vsub.s32 %v301, %v2568
    %v2570 = vrot.slane %v2436, %v2569
    %v2571 = vlaneseq
    %v2572 = vshrl.u32 %v2571, 7
    %v2573 = vsub.s32 %v301, %v2572
    %v2574 = vrot.slane %v2439, %v2573
    %v2575 = vlaneseq
    %v2576 = vshrl.u32 %v2575, 7
    %v2577 = vsub.s32 %v301, %v2576
    %v2578 = vrot.slane %v2442, %v2577
    %v2579 = vlaneseq
    %v2580 = vshrl.u32 %v2579, 7
    %v2581 = vsub.s32 %v301, %v2580
    %v2582 = vrot.slane %v2445, %v2581
    %v2583 = vlaneseq
    %v2584 = vshrl.u32 %v2583, 7
    %v2585 = vsub.s32 %v301, %v2584
    %v2586 = vrot.slane %v2448, %v2585
    %v2587 = vlaneseq
    %v2588 = vshrl.u32 %v2587, 7
    %v2589 = vsub.s32 %v301, %v2588
    %v2590 = vrot.slane %v2451, %v2589
    %v2591 = vlaneseq
    %v2592 = vshrl.u32 %v2591, 7
    %v2593 = vsub.s32 %v301, %v2592
    %v2594 = vrot.slane %v2454, %v2593
    %v2595 = vlaneseq
    %v2596 = vshrl.u32 %v2595, 7
    %v2597 = vsub.s32 %v301, %v2596
    %v2598 = vrot.slane %v2457, %v2597
    %v2599 = vlaneseq
    %v2600 = vshrl.u32 %v2599, 7
    %v2601 = vsub.s32 %v301, %v2600
    %v2602 = vrot.slane %v2460, %v2601
    %v2603 = vlaneseq
    %v2604 = vshrl.u32 %v2603, 7
    %v2605 = vsub.s32 %v301, %v2604
    %v2606 = vrot.slane %v2463, %v2605
    %v2607 = vlaneseq
    %v2608 = vshrl.u32 %v2607, 7
    %v2609 = vsub.s32 %v301, %v2608
    %v2610 = vrot.slane %v2466, %v2609
    %v2611 = vlaneseq
    %v2612 = vshrl.u32 %v2611, 7
    %v2613 = vsub.s32 %v301, %v2612
    %v2614 = vrot.slane %v2469, %v2613
    %v2615 = vlaneseq
    %v2616 = vshrl.u32 %v2615, 7
    %v2617 = vsub.s32 %v301, %v2616
    %v2618 = vrot.slane %v2472, %v2617
    %v2619 = vlaneseq
    %v2620 = vshrl.u32 %v2619, 7
    %v2621 = vsub.s32 %v301, %v2620
    %v2622 = vrot.slane %v2475, %v2621
    %v2623 = vlaneseq
    %v2624 = vshrl.u32 %v2623, 7
    %v2625 = vsub.s32 %v301, %v2624
    %v2626 = vrot.slane %v2478, %v2625
    %v2627 = vlaneseq
    %v2628 = vshrl.u32 %v2627, 7
    %v2629 = vsub.s32 %v301, %v2628
    %v2630 = vrot.slane %v2481, %v2629
    %v2631 = vlaneseq
    %v2632 = vshrl.u32 %v2631, 7
    %v2633 = vsub.s32 %v301, %v2632
    %v2634 = vrot.slane %v2484, %v2633
    %v2635 = vlaneseq
    %v2636 = vshrl.u32 %v2635, 7
    %v2637 = vsub.s32 %v301, %v2636
    %v2638 = vrot.slane %v2487, %v2637
    %v2639 = vlaneseq
    %v2640 = vshrl.u32 %v2639, 7
    %v2641 = vsub.s32 %v301, %v2640
    %v2642 = vrot.slane %v2490, %v2641
    %v2643 = vlaneseq
    %v2644 = vshrl.u32 %v2643, 7
    %v2645 = vsub.s32 %v301, %v2644
    %v2646 = vrot.slane %v2493, %v2645
    %v2647 = vlaneseq
    %v2648 = vshrl.u32 %v2647, 7
    %v2649 = vsub.s32 %v301, %v2648
    %v2650 = vrot.slane %v2496, %v2649
    %v2651 = vlaneseq
    %v2652 = vshrl.u32 %v2651, 7
    %v2653 = vsub.s32 %v301, %v2652
    %v2654 = vrot.slane %v2499, %v2653
    %v2655 = vlaneseq
    %v2656 = vshrl.u32 %v2655, 7
    %v2657 = vsub.s32 %v301, %v2656
    %v2658 = vrot.slane %v2502, %v2657
    %v2659 = vlaneseq
    %v2660 = vshrl.u32 %v2659, 7
    %v2661 = vsub.s32 %v301, %v2660
    %v2662 = vrot.slane %v2505, %v2661
    %v2663 = vlaneseq
    %v2664 = vshrl.u32 %v2663, 7
    %v2665 = vsub.s32 %v301, %v2664
    %v2666 = vrot.slane %v2508, %v2665
    %v2667 = vlaneseq
    %v2668 = vshrl.u32 %v2667, 7
    %v2669 = vsub.s32 %v301, %v2668
    %v2670 = vrot.slane %v2511, %v2669
    %v2671 = vlaneseq
    %v2672 = vshrl.u32 %v2671, 7
    %v2673 = vsub.s32 %v301, %v2672
    %v2674 = vrot.slane %v2514, %v2673
    %v2675 = vsel %vm460, %v2554, %v2550
    %v2676 = vsel %vm462, %v2558, %v2675
    %v2677 = vsel %vm464, %v2562, %v2676
    %v2678 = vsel %vm466, %v2566, %v2677
    %v2679 = vsel %vm468, %v2570, %v2678
    %v2680 = vsel %vm470, %v2574, %v2679
    %v2681 = vsel %vm472, %v2578, %v2680
    %v2682 = vsel %vm460, %v2586, %v2582
    %v2683 = vsel %vm462, %v2590, %v2682
    %v2684 = vsel %vm464, %v2594, %v2683
    %v2685 = vsel %vm466, %v2598, %v2684
    %v2686 = vsel %vm468, %v2602, %v2685
    %v2687 = vsel %vm470, %v2606, %v2686
    %v2688 = vsel %vm472, %v2610, %v2687
    %v2689 = vsel %vm460, %v2618, %v2614
    %v2690 = vsel %vm462, %v2622, %v2689
    %v2691 = vsel %vm464, %v2626, %v2690
    %v2692 = vsel %vm466, %v2630, %v2691
    %v2693 = vsel %vm468, %v2634, %v2692
    %v2694 = vsel %vm470, %v2638, %v2693
    %v2695 = vsel %vm472, %v2642, %v2694
    %v2696 = vsel %vm460, %v2650, %v2646
    %v2697 = vsel %vm462, %v2654, %v2696
    %v2698 = vsel %vm464, %v2658, %v2697
    %v2699 = vsel %vm466, %v2662, %v2698
    %v2700 = vsel %vm468, %v2666, %v2699
    %v2701 = vsel %vm470, %v2670, %v2700
    %v2702 = vsel %vm472, %v2674, %v2701
    %vm2707 = vcmask 31744
    %2708 = vst.msk [vmem:[%s2] sm:$0xff] %vm2707, %v2681
    %2709 = vst.msk [vmem:[%s2 + $0x8] sm:$0xff] %vm2707, %v2688
    %2710 = vst.msk [vmem:[%s2 + $0x10] sm:$0xff] %vm2707, %v2695
    %2711 = vst.msk [vmem:[%s2 + $0x18] sm:$0xff] %vm2707, %v2702
    // Predicated region
    $region18: #{tpu_custom_call.1} parent=1 // pred_check
      _
    $region19: #{tpu_custom_call.1} parent=1 // pred_check_branch
      %2713 = sbr.rel (0) target = $region21
    $region20: #{tpu_custom_call.1} parent=1 // pred_region
      _
    $region21: #{tpu_custom_call.1} parent=1 // pred_fallthru
      _
    // Predicated region
    $region22: #{tpu_custom_call.1} parent=1 // pred_check
      _
    $region23: #{tpu_custom_call.1} parent=1 // pred_check_branch
      %2715 = sbr.rel (0) target = $region25
    $region24: #{tpu_custom_call.1} parent=1 // pred_region
      _
    $region25: #{tpu_custom_call.1} parent=1 // pred_fallthru
      _
    %2716 = vsyncpa [#allocation3], 1
    %2717 = vsyncpa [#allocation5], 1

</llo_original>
